<compile_context>
chip_gen: v6e
topology: v6e:2x2x1
jax: 0.10.0
libtpu: 0.0.40
codegen_flags: <defaults>
</compile_context>

<pallas_src>
import functools

import jax
import jax.numpy as jnp
import numpy as np
from jax.experimental import pallas as pl
from jax.experimental.pallas import tpu as pltpu


# ---------------------------------------------------------------------------
# Chip-aware scoped-VMEM limit
# ---------------------------------------------------------------------------
def _vmem_limit_bytes():
    """~half of physical VMEM (64 MiB on 128-MiB v5e/v6e, 32 MiB on 64-MiB v7x);
    conservative 32 MiB fallback if the hardware query is unavailable."""
    try:
        cap = int(pltpu.get_tpu_info().vmem_capacity_bytes)
        return max(32 * 1024 * 1024, min(cap // 2, 100 * 1024 * 1024))
    except Exception:
        return 32 * 1024 * 1024


# ---------------------------------------------------------------------------
# Tiled matmul kernels (fused QKV projection and fused output projection)
# ---------------------------------------------------------------------------
def _matmul_kernel_acc(x_ref, w_ref, o_ref, acc_ref):
    @pl.when(pl.program_id(2) == 0)
    def _():
        acc_ref[...] = jnp.zeros_like(acc_ref)

    acc_ref[...] += jnp.dot(x_ref[...], w_ref[...],
                            preferred_element_type=jnp.float32)

    @pl.when(pl.program_id(2) == pl.num_programs(2) - 1)
    def _():
        o_ref[...] = acc_ref[...].astype(o_ref.dtype)


def _matmul_kernel_single(x_ref, w_ref, o_ref):
    # Single K step: write straight to the output tile, no fp32 scratch round trip.
    o_ref[...] = jnp.dot(x_ref[...], w_ref[...],
                         preferred_element_type=jnp.float32).astype(o_ref.dtype)


def _pick_tile(dim, pref, align):
    """Largest multiple of `align` that divides `dim`, capped at `pref`; falls back to
    the full dim (always a legal block extent) when `dim` is not `align`-aligned."""
    if dim % align != 0:
        return dim
    t = min(pref, dim)
    t -= t % align
    while dim % t != 0:
        t -= align
    return t


def pallas_matmul(x, w, out_dtype=jnp.float32, *, tm_pref=512, tn_pref=512,
                  tk_pref=512, vmem_limit=None):
    """x: (M, K) @ w: (K, N) -> (M, N); fp32 accumulation, tiled + pipelined."""
    M, K = x.shape
    K2, N = w.shape
    assert K == K2
    tm = _pick_tile(M, tm_pref, 8)
    tn = _pick_tile(N, tn_pref, 128)
    tk = _pick_tile(K, tk_pref, 128)
    nk = K // tk
    if nk == 1:
        kernel, scratch = _matmul_kernel_single, []
    else:
        kernel, scratch = _matmul_kernel_acc, [pltpu.VMEM((tm, tn), jnp.float32)]
    if vmem_limit is None:
        vmem_limit = _vmem_limit_bytes()
    return pl.pallas_call(
        kernel,
        out_shape=jax.ShapeDtypeStruct((M, N), out_dtype),
        grid_spec=pltpu.PrefetchScalarGridSpec(
            num_scalar_prefetch=0,
            grid=(M // tm, N // tn, nk),
            in_specs=[
                pl.BlockSpec((tm, tk), lambda i, j, k: (i, k)),
                pl.BlockSpec((tk, tn), lambda i, j, k: (k, j)),
            ],
            out_specs=pl.BlockSpec((tm, tn), lambda i, j, k: (i, j)),
            scratch_shapes=scratch,
        ),
        compiler_params=pltpu.CompilerParams(
            dimension_semantics=("parallel", "parallel", "arbitrary"),
            vmem_limit_bytes=vmem_limit,
        ),
    )(x, w)


# ---------------------------------------------------------------------------
# Segment-recurrence kernel (compressive memory, update="linear", causal=False)
# ---------------------------------------------------------------------------
def _cm_segment_kernel(q_ref, k_ref, v_ref, beta_ref, o_ref, mem_ref, z_ref, *,
                       mxu_dtype):
    """Per (head-block, segment) compressive-memory attention.

    q_ref/k_ref: (tg, L, dk); v_ref: (tg, L, dv); beta_ref: (tg, 1, dv) [sigmoid applied].
    o_ref: (1, tg, L, dv).  Scratch: mem_ref (tg, dk, dv), z_ref (tg, 1, dk) — fp32,
    carried across the segment ("arbitrary") axis, reinitialized at seg == 0.
    """
    seg = pl.program_id(1)
    dk = q_ref.shape[-1]

    @pl.when(seg == 0)
    def _():
        mem_ref[...] = jnp.zeros(mem_ref.shape, mem_ref.dtype)
        z_ref[...] = jnp.full(z_ref.shape, 1.0 / dk, z_ref.dtype)

    q = q_ref[...].astype(jnp.float32)
    k = k_ref[...].astype(jnp.float32)
    v_m = v_ref[...].astype(mxu_dtype)
    mem = mem_ref[...]
    z = z_ref[...]

    # elu(x) + 1; exp only evaluated on the non-positive branch argument. Elementwise
    # math stays fp32 (v5e has no bf16 VPU/EUP); MXU operands are cast right at the dot.
    sq = jnp.where(q > 0, q + 1.0, jnp.exp(jnp.minimum(q, 0.0)))
    sk = jnp.where(k > 0, k + 1.0, jnp.exp(jnp.minimum(k, 0.0)))

    # Local (non-causal) softmax attention within the segment. dk**-0.5 folded into q,
    # normalization deferred to the (L, dv) result (saves two (L, L) VPU multiplies).
    q_s = (q * (dk ** -0.5)).astype(mxu_dtype)
    scores = jnp.einsum("gld,gmd->glm", q_s, k.astype(mxu_dtype),
                        preferred_element_type=jnp.float32)
    s_max = jnp.max(scores, axis=-1, keepdims=True)
    p = jnp.exp(scores - s_max)
    dpa = jnp.einsum("glm,gmd->gld", p.astype(mxu_dtype), v_m,
                     preferred_element_type=jnp.float32)
    dpa = dpa * pl.reciprocal(jnp.sum(p, axis=-1, keepdims=True), approx=True)

    # Compressive-memory read (uses the state from before this segment's update).
    num = jnp.einsum("gld,gde->gle", sq.astype(mxu_dtype), mem.astype(mxu_dtype),
                     preferred_element_type=jnp.float32)
    den = jnp.sum(sq * z, axis=-1, keepdims=True)          # (tg, L, 1)
    att_mem = num * pl.reciprocal(den, approx=True)

    # Linear memory / normalizer update (fp32 state, consumed by later segments).
    mem_ref[...] = mem + jnp.einsum("gld,gle->gde", sk.astype(mxu_dtype), v_m,
                                    preferred_element_type=jnp.float32)
    z_ref[...] = z + jnp.sum(sk, axis=-2, keepdims=True)

    beta = beta_ref[...].astype(jnp.float32)                # sigmoid applied in prep
    att = beta * att_mem + (1.0 - beta) * dpa
    # (tg, L, dv) -> (1, tg, L, dv): pure leading-axis expand, no relayout.
    o_ref[...] = att.reshape(o_ref.shape).astype(o_ref.dtype)


def _divisors(n):
    return [d for d in range(1, n + 1) if n % d == 0]


def _pick_recurrence_block(B, H, L, dk, dv, vmem_budget):
    """Head-block size (divisor of H), VMEM-bounded, preferring >= 2 steps on the
    parallel grid axis so v7x's second TensorCore gets work."""
    per_g = 4.0 * (2 * (2 * L * dk + 3 * L * dv)   # double-buffered q, k, v, out
                   + 2 * L * L                     # scores + probabilities
                   + 2 * L * dv + 2 * L * dk       # dpa/att_mem + sq/sk temps
                   + dk * dv + dk)                 # mem + z scratch
    cap = max(1, int(vmem_budget // per_g))
    cands = [c for c in _divisors(H) if c <= cap] or [1]
    G = B * H
    multi = [c for c in cands if G // c >= 2]
    return max(multi) if multi else max(cands)
    # TODO(synk): for production segment lengths (L >= ~1024 on v7x) the (L, L) score
    # slab needs an inner flash-style loop over key chunks rather than only shrinking tg.


# ---------------------------------------------------------------------------
# One-time parameter preparation (no per-call transposes / concats / casts / sigmoid)
# ---------------------------------------------------------------------------
def prepare_params(params, *, mxu_dtype=jnp.bfloat16):
    w_dtype = jnp.float32 if mxu_dtype is None else mxu_dtype
    w_qkv = jnp.concatenate([params["Wq"].T, params["Wk"].T, params["Wv"].T],
                            axis=1).astype(w_dtype)              # (Din, H*(2dk+dv))
    w_o = params["Wo"].T.astype(w_dtype)                         # (H*dv, Din)
    beta_sig = jax.nn.sigmoid(params["betas"].astype(jnp.float32))  # (1, H, 1, dv)
    return w_qkv, w_o, beta_sig


# ---------------------------------------------------------------------------
# Forward wrapper
# ---------------------------------------------------------------------------
def compressive_memory_forward(x, w_qkv, w_o, beta_sig, *, num_heads, dim_key,
                               dim_value, segment_length,
                               mxu_dtype=jnp.bfloat16, out_dtype=jnp.float32):
    B, S, Din = x.shape
    H, dk, dv, L = num_heads, dim_key, dim_value, segment_length
    # TODO(synk): ragged final segment (S % L != 0), causal masking, delta update,
    # position embedder, sampling mask and learnable init state are not implemented.
    assert S % L == 0, "segment_length must divide seq_len for this kernel"
    nseg = S // L
    G = B * H
    mm_dtype = jnp.float32 if mxu_dtype is None else mxu_dtype
    vmem_limit = _vmem_limit_bytes()

    # ---- fused QKV projection: one tiled matmul, bf16 in / bf16 out, fp32 accum ----
    x2 = x.reshape(B * S, Din).astype(mm_dtype)
    qkv = pallas_matmul(x2, w_qkv.astype(mm_dtype), out_dtype=mm_dtype,
                        vmem_limit=vmem_limit)                  # (B*S, H*(2dk+dv))
    # Column split + PyTorch-style flat `.view(B, H, S, d)` (free reshape of the slice).
    # TODO(synk): the three strided column slices cost roughly one extra HBM round trip
    # of the qkv slab; a 3-output matmul would remove it.
    qp = qkv[:, : H * dk].reshape(G, S, dk)
    kp = qkv[:, H * dk: 2 * H * dk].reshape(G, S, dk)
    vp = qkv[:, 2 * H * dk:].reshape(G, S, dv)

    beta_g = jnp.broadcast_to(beta_sig.reshape(1, H, 1, dv),
                              (B, H, 1, dv)).reshape(G, 1, dv)

    # ---- segment recurrence: grid = (head blocks [parallel], segments [arbitrary]) ----
    tg = _pick_recurrence_block(B, H, L, dk, dv, vmem_budget=vmem_limit // 2)
    hpb = H // tg
    if hpb == 1:
        out_index = lambda g, s: (g * nseg + s, 0, 0, 0)
    else:
        out_index = lambda g, s: ((g // hpb) * nseg + s, g % hpb, 0, 0)

    att = pl.pallas_call(
        functools.partial(_cm_segment_kernel, mxu_dtype=mm_dtype),
        out_shape=jax.ShapeDtypeStruct((B * nseg, H, L, dv), mm_dtype),
        grid_spec=pltpu.PrefetchScalarGridSpec(
            num_scalar_prefetch=0,
            grid=(G // tg, nseg),
            in_specs=[
                pl.BlockSpec((tg, L, dk), lambda g, s: (g, s, 0)),
                pl.BlockSpec((tg, L, dk), lambda g, s: (g, s, 0)),
                pl.BlockSpec((tg, L, dv), lambda g, s: (g, s, 0)),
                pl.BlockSpec((tg, 1, dv), lambda g, s: (g, 0, 0)),
            ],
            out_specs=pl.BlockSpec((1, tg, L, dv), out_index),
            scratch_shapes=[
                pltpu.VMEM((tg, dk, dv), jnp.float32),   # compressive memory (fp32)
                pltpu.VMEM((tg, 1, dk), jnp.float32),    # normalizer z^T (fp32)
            ],
        ),
        compiler_params=pltpu.CompilerParams(
            dimension_semantics=("parallel", "arbitrary"),
            vmem_limit_bytes=vmem_limit,
        ),
    )(qp, kp, vp, beta_g)

    # ---- fused output projection ----
    # (B*nseg, H, L, dv) -> (B*S, H*dv) is a pure metadata reshape whose rows land in
    # final (b, seq) order and whose columns reproduce PyTorch's per-segment
    # `att.view(B, L, H*dv)` quirk exactly — no transpose / relayout pass needed.
    att2 = att.reshape(B * S, H * dv)
    out = pallas_matmul(att2, w_o.astype(mm_dtype), out_dtype=out_dtype,
                        vmem_limit=vmem_limit)                  # (B*S, Din)
    return out.reshape(B, S, Din)


# ---------------------------------------------------------------------------
# Pure-JAX reference (mirrors the PyTorch forward) for verification
# ---------------------------------------------------------------------------
def reference_forward(x, params, *, num_heads, dim_key, dim_value, segment_length):
    B, S, Din = x.shape
    H, dk, dv, L = num_heads, dim_key, dim_value, segment_length
    nseg = S // L
    kp = (x @ params["Wk"].T).reshape(B, H, S, dk)
    vp = (x @ params["Wv"].T).reshape(B, H, S, dv)
    qp = (x @ params["Wq"].T).reshape(B, H, S, dk)
    mem = jnp.zeros((B, H, dk, dv), jnp.float32)
    z = jnp.ones((B, H, dk, 1), jnp.float32) / dk
    outs = []
    for seg in range(nseg):
        s0, s1 = seg * L, (seg + 1) * L
        k = kp[:, :, s0:s1]
        v = vp[:, :, s0:s1]
        q = qp[:, :, s0:s1]
        sq = jax.nn.elu(q) + 1.0
        scores = jnp.einsum("bhld,bhmd->bhlm", q, k) / dk ** 0.5
        dpa = jnp.einsum("bhlm,bhmd->bhld", jax.nn.softmax(scores, axis=-1), v)
        att_mem = jnp.einsum("bhld,bhde->bhle", sq, mem) / (
            jnp.einsum("bhld,bhdo->bhlo", sq, z)
        )
        sk = jax.nn.elu(k) + 1.0
        mem = mem + jnp.einsum("bhld,bhle->bhde", sk, v)
        z = z + jnp.swapaxes(jnp.sum(sk, axis=-2, keepdims=True), -2, -1)
        b = jax.nn.sigmoid(params["betas"])
        att = b * att_mem + (1.0 - b) * dpa
        outs.append(att.reshape(B, L, H * dv) @ params["Wo"].T)
    return jnp.concatenate(outs, axis=1)


# ---------------------------------------------------------------------------
if __name__ == "__main__":
    dim_input = 32
    dim_key = 16
    dim_value = 16
    num_heads = 2
    segment_length = 8
    B, S = 2, 16  # 2 segments

    key = jax.random.PRNGKey(0)
    k1, k2, k3, k4, k5, kx = jax.random.split(key, 6)
    params = {
        "Wk": jax.random.normal(k1, (num_heads * dim_key, dim_input), jnp.float32) * 0.05,
        "Wv": jax.random.normal(k2, (num_heads * dim_value, dim_input), jnp.float32) * 0.05,
        "Wq": jax.random.normal(k3, (num_heads * dim_key, dim_input), jnp.float32) * 0.05,
        "Wo": jax.random.normal(k4, (dim_input, num_heads * dim_value), jnp.float32) * 0.05,
        "betas": jax.random.normal(k5, (1, num_heads, 1, dim_value), jnp.float32),
    }
    x = jax.random.normal(kx, (B, S, dim_input), jnp.float32)

    w_qkv, w_o, beta_sig = prepare_params(params, mxu_dtype=jnp.bfloat16)

    fwd = jax.jit(functools.partial(
        compressive_memory_forward,
        num_heads=num_heads, dim_key=dim_key, dim_value=dim_value,
        segment_length=segment_length, mxu_dtype=jnp.bfloat16))

    out = jax.block_until_ready(fwd(x, w_qkv, w_o, beta_sig))

    ref = reference_forward(
        x, params,
        num_heads=num_heads, dim_key=dim_key, dim_value=dim_value,
        segment_length=segment_length,
    )
    np.testing.assert_allclose(np.asarray(out), np.asarray(ref), rtol=2e-2, atol=2e-2)
    assert out.shape == (B, S, dim_input)

    print("KERNEL_OK")
</pallas_src>

<mosaic_0001>
module attributes {stable_mosaic.version = 11 : i64} {
  func.func @_matmul_kernel_single(%arg0: i32, %arg1: i32, %arg2: i32, %arg3: memref<32x32xbf16, #tpu.memory_space<vmem>>, %arg4: memref<32x96xbf16, #tpu.memory_space<vmem>>, %arg5: memref<32x96xbf16, #tpu.memory_space<vmem>>) attributes {dimension_semantics = [#tpu.dimension_semantics<parallel>, #tpu.dimension_semantics<parallel>, #tpu.dimension_semantics<arbitrary>], iteration_bounds = array<i64: 1, 1, 1>, scalar_prefetch = 0 : i64, scratch_operands = 0 : i64, tpu.core_type = #tpu.core_type<tc>, window_params = [{transform_indices = @transform_0, window_bounds = array<i64: 32, 32>}, {transform_indices = @transform_1, window_bounds = array<i64: 32, 96>}, {transform_indices = @transform_2, window_bounds = array<i64: 32, 96>}]} {
    %c0 = arith.constant 0 : index
    %c0_0 = arith.constant 0 : index
    %0 = vector.load %arg3[%c0, %c0_0] : memref<32x32xbf16, #tpu.memory_space<vmem>>, vector<32x32xbf16>
    %c0_1 = arith.constant 0 : index
    %c0_2 = arith.constant 0 : index
    %1 = vector.load %arg4[%c0_1, %c0_2] : memref<32x96xbf16, #tpu.memory_space<vmem>>, vector<32x96xbf16>
    %cst = arith.constant dense<0.000000e+00> : vector<32x96xf32>
    %2 = tpu.matmul %0, %1, %cst {dimension_numbers = #tpu.dot_dimension_numbers<[1], [0], [0], [1], [0, 0, 1, 1], [], []>} : vector<32x32xbf16>, vector<32x96xbf16>, vector<32x96xf32> -> vector<32x96xf32>
    %3 = arith.truncf %2 : vector<32x96xf32> to vector<32x96xbf16>
    %c0_3 = arith.constant 0 : index
    %c0_4 = arith.constant 0 : index
    %4 = vector.load %arg5[%c0_3, %c0_4] : memref<32x96xbf16, #tpu.memory_space<vmem>>, vector<32x96xbf16>
    tpu.vector_store %arg5[%c0_3, %c0_4], %3 {strides = array<i32>} : memref<32x96xbf16, #tpu.memory_space<vmem>>, vector<32x96xbf16>,
    return
  }
  func.func @transform_0(%arg0: i32, %arg1: i32, %arg2: i32) -> (i32, i32) {
    %c0_i32 = arith.constant 0 : i32
    return %arg0, %arg2 : i32, i32
  }
  func.func @transform_1(%arg0: i32, %arg1: i32, %arg2: i32) -> (i32, i32) {
    %c0_i32 = arith.constant 0 : i32
    return %arg2, %arg1 : i32, i32
  }
  func.func @transform_2(%arg0: i32, %arg1: i32, %arg2: i32) -> (i32, i32) {
    %c0_i32 = arith.constant 0 : i32
    return %arg0, %arg1 : i32, i32
  }
}

module attributes {stable_mosaic.version = 11 : i64} {
  func.func @_matmul_kernel_single(%arg0: i32, %arg1: i32, %arg2: i32, %arg3: memref<32x32xbf16, #tpu.memory_space<vmem>>, %arg4: memref<32x32xbf16, #tpu.memory_space<vmem>>, %arg5: memref<32x32xf32, #tpu.memory_space<vmem>>) attributes {dimension_semantics = [#tpu.dimension_semantics<parallel>, #tpu.dimension_semantics<parallel>, #tpu.dimension_semantics<arbitrary>], iteration_bounds = array<i64: 1, 1, 1>, scalar_prefetch = 0 : i64, scratch_operands = 0 : i64, tpu.core_type = #tpu.core_type<tc>, window_params = [{transform_indices = @transform_0, window_bounds = array<i64: 32, 32>}, {transform_indices = @transform_1, window_bounds = array<i64: 32, 32>}, {transform_indices = @transform_2, window_bounds = array<i64: 32, 32>}]} {
    %c0 = arith.constant 0 : index
    %c0_0 = arith.constant 0 : index
    %0 = vector.load %arg3[%c0, %c0_0] : memref<32x32xbf16, #tpu.memory_space<vmem>>, vector<32x32xbf16>
    %c0_1 = arith.constant 0 : index
    %c0_2 = arith.constant 0 : index
    %1 = vector.load %arg4[%c0_1, %c0_2] : memref<32x32xbf16, #tpu.memory_space<vmem>>, vector<32x32xbf16>
    %cst = arith.constant dense<0.000000e+00> : vector<32x32xf32>
    %2 = tpu.matmul %0, %1, %cst {dimension_numbers = #tpu.dot_dimension_numbers<[1], [0], [0], [1], [0, 0, 1, 1], [], []>} : vector<32x32xbf16>, vector<32x32xbf16>, vector<32x32xf32> -> vector<32x32xf32>
    %c0_3 = arith.constant 0 : index
    %c0_4 = arith.constant 0 : index
    %3 = vector.load %arg5[%c0_3, %c0_4] : memref<32x32xf32, #tpu.memory_space<vmem>>, vector<32x32xf32>
    tpu.vector_store %arg5[%c0_3, %c0_4], %2 {strides = array<i32>} : memref<32x32xf32, #tpu.memory_space<vmem>>, vector<32x32xf32>,
    return
  }
  func.func @transform_0(%arg0: i32, %arg1: i32, %arg2: i32) -> (i32, i32) {
    %c0_i32 = arith.constant 0 : i32
    return %arg0, %arg2 : i32, i32
  }
  func.func @transform_1(%arg0: i32, %arg1: i32, %arg2: i32) -> (i32, i32) {
    %c0_i32 = arith.constant 0 : i32
    return %arg2, %arg1 : i32, i32
  }
  func.func @transform_2(%arg0: i32, %arg1: i32, %arg2: i32) -> (i32, i32) {
    %c0_i32 = arith.constant 0 : i32
    return %arg0, %arg1 : i32, i32
  }
}

module attributes {stable_mosaic.version = 11 : i64} {
  func.func @_cm_segment_kernel(%arg0: i32, %arg1: i32, %arg2: memref<2x8x16xbf16, #tpu.memory_space<vmem>>, %arg3: memref<2x8x16xbf16, #tpu.memory_space<vmem>>, %arg4: memref<2x8x16xbf16, #tpu.memory_space<vmem>>, %arg5: memref<2x1x16xf32, #tpu.memory_space<vmem>>, %arg6: memref<1x2x8x16xbf16, #tpu.memory_space<vmem>>, %arg7: memref<2x16x16xf32, #tpu.memory_space<vmem>>, %arg8: memref<2x1x16xf32, #tpu.memory_space<vmem>>) attributes {dimension_semantics = [#tpu.dimension_semantics<parallel>, #tpu.dimension_semantics<arbitrary>], iteration_bounds = array<i64: 2, 2>, scalar_prefetch = 0 : i64, scratch_operands = 2 : i64, tpu.core_type = #tpu.core_type<tc>, window_params = [{transform_indices = @transform_0, window_bounds = array<i64: 2, 8, 16>}, {transform_indices = @transform_1, window_bounds = array<i64: 2, 8, 16>}, {transform_indices = @transform_2, window_bounds = array<i64: 2, 8, 16>}, {transform_indices = @transform_3, window_bounds = array<i64: 2, 1, 16>}, {transform_indices = @transform_4, window_bounds = array<i64: 1, 2, 8, 16>}]} {
    %c0_i32 = arith.constant 0 : i32
    %0 = arith.cmpi eq, %arg1, %c0_i32 : i32
    %1 = arith.extui %0 : i1 to i32
    %c0_i32_0 = arith.constant 0 : i32
    %2 = arith.cmpi ne, %1, %c0_i32_0 : i32
    scf.if %2 {
      %cst_43 = arith.constant 0.000000e+00 : f32
      %72 = vector.broadcast %cst_43 : f32 to vector<2x16x16xf32>
      %c0_44 = arith.constant 0 : index
      %c0_45 = arith.constant 0 : index
      %c0_46 = arith.constant 0 : index
      %73 = vector.load %arg7[%c0_44, %c0_45, %c0_46] : memref<2x16x16xf32, #tpu.memory_space<vmem>>, vector<2x16x16xf32>
      tpu.vector_store %arg7[%c0_44, %c0_45, %c0_46], %72 {strides = array<i32>} : memref<2x16x16xf32, #tpu.memory_space<vmem>>, vector<2x16x16xf32>,
      %cst_47 = arith.constant 6.250000e-02 : f32
      %74 = vector.broadcast %cst_47 : f32 to vector<2x1x16xf32>
      %c0_48 = arith.constant 0 : index
      %c0_49 = arith.constant 0 : index
      %c0_50 = arith.constant 0 : index
      %75 = vector.load %arg8[%c0_48, %c0_49, %c0_50] : memref<2x1x16xf32, #tpu.memory_space<vmem>>, vector<2x1x16xf32>
      tpu.vector_store %arg8[%c0_48, %c0_49, %c0_50], %74 {strides = array<i32>} : memref<2x1x16xf32, #tpu.memory_space<vmem>>, vector<2x1x16xf32>,
    } else {
    }
    %c0 = arith.constant 0 : index
    %c0_1 = arith.constant 0 : index
    %c0_2 = arith.constant 0 : index
    %3 = vector.load %arg2[%c0, %c0_1, %c0_2] : memref<2x8x16xbf16, #tpu.memory_space<vmem>>, vector<2x8x16xbf16>
    %4 = arith.extf %3 : vector<2x8x16xbf16> to vector<2x8x16xf32>
    %c0_3 = arith.constant 0 : index
    %c0_4 = arith.constant 0 : index
    %c0_5 = arith.constant 0 : index
    %5 = vector.load %arg3[%c0_3, %c0_4, %c0_5] : memref<2x8x16xbf16, #tpu.memory_space<vmem>>, vector<2x8x16xbf16>
    %6 = arith.extf %5 : vector<2x8x16xbf16> to vector<2x8x16xf32>
    %c0_6 = arith.constant 0 : index
    %c0_7 = arith.constant 0 : index
    %c0_8 = arith.constant 0 : index
    %7 = vector.load %arg4[%c0_6, %c0_7, %c0_8] : memref<2x8x16xbf16, #tpu.memory_space<vmem>>, vector<2x8x16xbf16>
    %c0_9 = arith.constant 0 : index
    %c0_10 = arith.constant 0 : index
    %c0_11 = arith.constant 0 : index
    %8 = vector.load %arg7[%c0_9, %c0_10, %c0_11] : memref<2x16x16xf32, #tpu.memory_space<vmem>>, vector<2x16x16xf32>
    %c0_12 = arith.constant 0 : index
    %c0_13 = arith.constant 0 : index
    %c0_14 = arith.constant 0 : index
    %9 = vector.load %arg8[%c0_12, %c0_13, %c0_14] : memref<2x1x16xf32, #tpu.memory_space<vmem>>, vector<2x1x16xf32>
    %cst = arith.constant 0.000000e+00 : f32
    %10 = vector.broadcast %cst : f32 to vector<2x8x16xf32>
    %11 = arith.cmpf ogt, %4, %10 : vector<2x8x16xf32>
    %cst_15 = arith.constant 1.000000e+00 : f32
    %12 = vector.broadcast %cst_15 : f32 to vector<2x8x16xf32>
    %13 = arith.addf %4, %12 : vector<2x8x16xf32>
    %cst_16 = arith.constant 0.000000e+00 : f32
    %14 = vector.broadcast %cst_16 : f32 to vector<2x8x16xf32>
    %15 = arith.minimumf %4, %14 : vector<2x8x16xf32>
    %16 = math.exp %15 : vector<2x8x16xf32>
    %17 = arith.select %11, %13, %16 : vector<2x8x16xi1>, vector<2x8x16xf32>
    %cst_17 = arith.constant 0.000000e+00 : f32
    %18 = vector.broadcast %cst_17 : f32 to vector<2x8x16xf32>
    %19 = arith.cmpf ogt, %6, %18 : vector<2x8x16xf32>
    %cst_18 = arith.constant 1.000000e+00 : f32
    %20 = vector.broadcast %cst_18 : f32 to vector<2x8x16xf32>
    %21 = arith.addf %6, %20 : vector<2x8x16xf32>
    %cst_19 = arith.constant 0.000000e+00 : f32
    %22 = vector.broadcast %cst_19 : f32 to vector<2x8x16xf32>
    %23 = arith.minimumf %6, %22 : vector<2x8x16xf32>
    %24 = math.exp %23 : vector<2x8x16xf32>
    %25 = arith.select %19, %21, %24 : vector<2x8x16xi1>, vector<2x8x16xf32>
    %cst_20 = arith.constant 2.500000e-01 : f32
    %26 = vector.broadcast %cst_20 : f32 to vector<2x8x16xf32>
    %27 = arith.mulf %4, %26 : vector<2x8x16xf32>
    %28 = arith.truncf %27 : vector<2x8x16xf32> to vector<2x8x16xbf16>
    %29 = arith.truncf %6 : vector<2x8x16xf32> to vector<2x8x16xbf16>
    "tpu.trace_start"() <{level = 10 : i32, message = "gld,gmd->glm"}> : () -> ()
    %cst_21 = arith.constant dense<0.000000e+00> : vector<2x8x8xf32>
    %30 = tpu.matmul %28, %29, %cst_21 {dimension_numbers = #tpu.dot_dimension_numbers<[2], [2], [1], [1], [0, 0, 0, 1, 1, 1], [0], [0]>} : vector<2x8x16xbf16>, vector<2x8x16xbf16>, vector<2x8x8xf32> -> vector<2x8x8xf32>
    "tpu.trace_stop"() : () -> ()
    %cst_22 = arith.constant dense<0xFF800000> : vector<2x8xf32>
    %31 = vector.multi_reduction <maximumf>, %30, %cst_22 [2] : vector<2x8x8xf32> to vector<2x8xf32>
    %32 = vector.shape_cast %31 : vector<2x8xf32> to vector<2x8x1xf32>
    %33 = vector.broadcast %32 : vector<2x8x1xf32> to vector<2x8x8xf32>
    %34 = arith.subf %30, %33 : vector<2x8x8xf32>
    %35 = math.exp %34 : vector<2x8x8xf32>
    %36 = arith.truncf %35 : vector<2x8x8xf32> to vector<2x8x8xbf16>
    "tpu.trace_start"() <{level = 10 : i32, message = "glm,gmd->gld"}> : () -> ()
    %cst_23 = arith.constant dense<0.000000e+00> : vector<2x8x16xf32>
    %37 = tpu.matmul %36, %7, %cst_23 {dimension_numbers = #tpu.dot_dimension_numbers<[2], [1], [1], [2], [0, 0, 0, 1, 1, 2], [0], [0]>} : vector<2x8x8xbf16>, vector<2x8x16xbf16>, vector<2x8x16xf32> -> vector<2x8x16xf32>
    "tpu.trace_stop"() : () -> ()
    %cst_24 = arith.constant dense<0.000000e+00> : vector<2x8xf32>
    %38 = vector.multi_reduction <add>, %35, %cst_24 [2] : vector<2x8x8xf32> to vector<2x8xf32>
    %39 = vector.shape_cast %38 : vector<2x8xf32> to vector<2x8x1xf32>
    %40 = tpu.reciprocal %39 {approx = true} : vector<2x8x1xf32> -> vector<2x8x1xf32>
    %41 = vector.broadcast %40 : vector<2x8x1xf32> to vector<2x8x16xf32>
    %42 = arith.mulf %37, %41 : vector<2x8x16xf32>
    %43 = arith.truncf %17 : vector<2x8x16xf32> to vector<2x8x16xbf16>
    %44 = arith.truncf %8 : vector<2x16x16xf32> to vector<2x16x16xbf16>
    "tpu.trace_start"() <{level = 10 : i32, message = "gld,gde->gle"}> : () -> ()
    %cst_25 = arith.constant dense<0.000000e+00> : vector<2x8x16xf32>
    %45 = tpu.matmul %43, %44, %cst_25 {dimension_numbers = #tpu.dot_dimension_numbers<[2], [1], [1], [2], [0, 0, 0, 1, 1, 2], [0], [0]>} : vector<2x8x16xbf16>, vector<2x16x16xbf16>, vector<2x8x16xf32> -> vector<2x8x16xf32>
    "tpu.trace_stop"() : () -> ()
    %46 = vector.broadcast %9 : vector<2x1x16xf32> to vector<2x8x16xf32>
    %47 = arith.mulf %17, %46 : vector<2x8x16xf32>
    %cst_26 = arith.constant dense<0.000000e+00> : vector<2x8xf32>
    %48 = vector.multi_reduction <add>, %47, %cst_26 [2] : vector<2x8x16xf32> to vector<2x8xf32>
    %49 = vector.shape_cast %48 : vector<2x8xf32> to vector<2x8x1xf32>
    %50 = tpu.reciprocal %49 {approx = true} : vector<2x8x1xf32> -> vector<2x8x1xf32>
    %51 = vector.broadcast %50 : vector<2x8x1xf32> to vector<2x8x16xf32>
    %52 = arith.mulf %45, %51 : vector<2x8x16xf32>
    %53 = arith.truncf %25 : vector<2x8x16xf32> to vector<2x8x16xbf16>
    "tpu.trace_start"() <{level = 10 : i32, message = "gld,gle->gde"}> : () -> ()
    %cst_27 = arith.constant dense<0.000000e+00> : vector<2x16x16xf32>
    %54 = tpu.matmul %53, %7, %cst_27 {dimension_numbers = #tpu.dot_dimension_numbers<[1], [1], [2], [2], [0, 0, 0, 2, 1, 2], [0], [0]>} : vector<2x8x16xbf16>, vector<2x8x16xbf16>, vector<2x16x16xf32> -> vector<2x16x16xf32>
    "tpu.trace_stop"() : () -> ()
    %55 = arith.addf %8, %54 : vector<2x16x16xf32>
    %c0_28 = arith.constant 0 : index
    %c0_29 = arith.constant 0 : index
    %c0_30 = arith.constant 0 : index
    %56 = vector.load %arg7[%c0_28, %c0_29, %c0_30] : memref<2x16x16xf32, #tpu.memory_space<vmem>>, vector<2x16x16xf32>
    tpu.vector_store %arg7[%c0_28, %c0_29, %c0_30], %55 {strides = array<i32>} : memref<2x16x16xf32, #tpu.memory_space<vmem>>, vector<2x16x16xf32>,
    %cst_31 = arith.constant dense<0.000000e+00> : vector<2x16xf32>
    %57 = vector.multi_reduction <add>, %25, %cst_31 [1] : vector<2x8x16xf32> to vector<2x16xf32>
    %58 = vector.shape_cast %57 : vector<2x16xf32> to vector<2x1x16xf32>
    %59 = arith.addf %9, %58 : vector<2x1x16xf32>
    %c0_32 = arith.constant 0 : index
    %c0_33 = arith.constant 0 : index
    %c0_34 = arith.constant 0 : index
    %60 = vector.load %arg8[%c0_32, %c0_33, %c0_34] : memref<2x1x16xf32, #tpu.memory_space<vmem>>, vector<2x1x16xf32>
    tpu.vector_store %arg8[%c0_32, %c0_33, %c0_34], %59 {strides = array<i32>} : memref<2x1x16xf32, #tpu.memory_space<vmem>>, vector<2x1x16xf32>,
    %c0_35 = arith.constant 0 : index
    %c0_36 = arith.constant 0 : index
    %c0_37 = arith.constant 0 : index
    %61 = vector.load %arg5[%c0_35, %c0_36, %c0_37] : memref<2x1x16xf32, #tpu.memory_space<vmem>>, vector<2x1x16xf32>
    %62 = vector.broadcast %61 : vector<2x1x16xf32> to vector<2x8x16xf32>
    %63 = arith.mulf %62, %52 : vector<2x8x16xf32>
    %cst_38 = arith.constant 1.000000e+00 : f32
    %64 = vector.broadcast %cst_38 : f32 to vector<2x1x16xf32>
    %65 = arith.subf %64, %61 : vector<2x1x16xf32>
    %66 = vector.broadcast %65 : vector<2x1x16xf32> to vector<2x8x16xf32>
    %67 = arith.mulf %66, %42 : vector<2x8x16xf32>
    %68 = arith.addf %63, %67 : vector<2x8x16xf32>
    %69 = vector.shape_cast %68 : vector<2x8x16xf32> to vector<1x2x8x16xf32>
    %70 = arith.truncf %69 : vector<1x2x8x16xf32> to vector<1x2x8x16xbf16>
    %c0_39 = arith.constant 0 : index
    %c0_40 = arith.constant 0 : index
    %c0_41 = arith.constant 0 : index
    %c0_42 = arith.constant 0 : index
    %71 = vector.load %arg6[%c0_39, %c0_40, %c0_41, %c0_42] : memref<1x2x8x16xbf16, #tpu.memory_space<vmem>>, vector<1x2x8x16xbf16>
    tpu.vector_store %arg6[%c0_39, %c0_40, %c0_41, %c0_42], %70 {strides = array<i32>} : memref<1x2x8x16xbf16, #tpu.memory_space<vmem>>, vector<1x2x8x16xbf16>,
    return
  }
  func.func @transform_0(%arg0: i32, %arg1: i32) -> (i32, i32, i32) {
    %c0_i32 = arith.constant 0 : i32
    %c0_i32_0 = arith.constant 0 : i32
    return %arg0, %arg1, %c0_i32 : i32, i32, i32
  }
  func.func @transform_1(%arg0: i32, %arg1: i32) -> (i32, i32, i32) {
    %c0_i32 = arith.constant 0 : i32
    %c0_i32_0 = arith.constant 0 : i32
    return %arg0, %arg1, %c0_i32 : i32, i32, i32
  }
  func.func @transform_2(%arg0: i32, %arg1: i32) -> (i32, i32, i32) {
    %c0_i32 = arith.constant 0 : i32
    %c0_i32_0 = arith.constant 0 : i32
    return %arg0, %arg1, %c0_i32 : i32, i32, i32
  }
  func.func @transform_3(%arg0: i32, %arg1: i32) -> (i32, i32, i32) {
    %c0_i32 = arith.constant 0 : i32
    %c0_i32_0 = arith.constant 0 : i32
    %c0_i32_1 = arith.constant 0 : i32
    return %arg0, %c0_i32, %c0_i32_0 : i32, i32, i32
  }
  func.func @transform_4(%arg0: i32, %arg1: i32) -> (i32, i32, i32, i32) {
    %c2_i32 = arith.constant 2 : i32
    %0 = arith.muli %arg0, %c2_i32 : i32
    %1 = arith.addi %0, %arg1 : i32
    %c0_i32 = arith.constant 0 : i32
    %c0_i32_0 = arith.constant 0 : i32
    %c0_i32_1 = arith.constant 0 : i32
    %c0_i32_2 = arith.constant 0 : i32
    return %1, %c0_i32, %c0_i32_0, %c0_i32_1 : i32, i32, i32, i32
  }
}

</mosaic_0001>

<llo_original>
// kernel: compressive_memory_forward.3
$region0: #{compressive_memory_forward.3}
  #allocation0 [shape = 'u32[]', space=smem, size = 0x4, offset = 0x4, fixed_abs, tag = 'smem constant byte address 0x4 - core index']
  #allocation1 [shape = 'u32[144,128]{1,0:T(1,128)}', space=vmem, size = 0x12000, scoped, tag = 'internal scratch']
  %s0 = inlined_call_operand.vmem [shape: bf16[32,32], index: 0, kind: input, shape index: {}]
  %s1 = inlined_call_operand.vmem [shape: bf16[32,96], index: 1, kind: input, shape index: {}]
  %s2 = inlined_call_operand.vmem [shape: bf16[32,96], index: 2, kind: output, shape index: {}]
  %s3 = sld [smem:[#allocation0]]
  $region18: #{compressive_memory_forward.3} parent=0
    _
  %s5 = ssub.s32 1, %s3
  %s6 = scalar_select 0, %s5, %s3
  // Predicated region
  $region2: #{compressive_memory_forward.3} parent=0 // pred_check
    _
  $region3: #{compressive_memory_forward.3} parent=0 // pred_check_branch
    %8 = sbr.rel (0) target = $region5
  $region4: #{compressive_memory_forward.3} parent=0 // pred_region
    _
  $region5: #{compressive_memory_forward.3} parent=0 // pred_fallthru
    _
  // Predicated region
  $region6: #{compressive_memory_forward.3} parent=0 // pred_check
    _
  $region7: #{compressive_memory_forward.3} parent=0 // pred_check_branch
    %10 = sbr.rel (0) target = $region9
  $region8: #{compressive_memory_forward.3} parent=0 // pred_region
    _
  $region9: #{compressive_memory_forward.3} parent=0 // pred_fallthru
    _
  %v12 = vld [vmem:[%s0] sm:$0xf]
  %v13 = vld [vmem:[%s0 + $0x4] sm:$0xf]
  %v14 = vld [vmem:[%s0 + $0x8] sm:$0xf]
  %v15 = vld [vmem:[%s0 + $0xc] sm:$0xf]
  %v16 = vld [vmem:[%s1] sm:$0xf]
  %v17 = vld [vmem:[%s1 + $0x4] sm:$0xf]
  %v18 = vld [vmem:[%s1 + $0x8] sm:$0xf]
  %v19 = vld [vmem:[%s1 + $0xc] sm:$0xf]
  %v24 = vunpack.c.l.b16 %v12
  %v25 = vunpack.c.l.b16 %v13
  %v26 = vunpack.c.l.b16 %v14
  %v27 = vunpack.c.l.b16 %v15
  %v28 = vpack.c.b16 %v25, %v24
  %v29 = vpack.c.b16 %v27, %v26
  %v34 = vunpack.c.l.b16 %v16
  %v35 = vunpack.c.l.b16 %v17
  %v36 = vunpack.c.l.b16 %v18
  %v37 = vunpack.c.l.b16 %v19
  %v38 = vpack.c.b16 %v35, %v34
  %v39 = vpack.c.b16 %v37, %v36
  %vm42 = vcmask 261120
  %v44 = vsel %vm42, %v28, 0
  %v47 = vsel %vm42, %v29, 0
  %49 = vmatprep.subr.bf16.mxu0 0
  %50 = vmatpush1.bf16.msra.mxu0 0
  %51 = vmatprep.subr.bf16.mxu0 0
  %52 = vmatpush1.bf16.msra.mxu0 0
  %53 = vmatprep.subr.bf16.mxu0 0
  %54 = vmatpush1.bf16.msra.mxu0 0
  %55 = vmatprep.subr.bf16.mxu0 0
  %56 = vmatpush1.bf16.msra.mxu0 0
  %57 = vmatprep.subr.bf16.mxu0 0
  %58 = vmatpush1.bf16.msra.mxu0 0
  %59 = vmatprep.subr.bf16.mxu0 0
  %60 = vmatpush1.bf16.msra.mxu0 0
  %61 = vmatprep.subr.bf16.mxu0 0
  %62 = vmatpush1.bf16.msra.mxu0 %v39
  %63 = vmatprep.subr.bf16.mxu0 0
  %64 = vmatpush1.bf16.msra.mxu0 %v38
  %65 = vmatprep.subr.bf16.mxu0 0
  %66 = vmatpush2.bf16.msra.mxu0 0
  %67 = vmatprep.subr.bf16.mxu0 0
  %68 = vmatpush2.bf16.msra.mxu0 0
  %69 = vmatprep.subr.bf16.mxu0 0
  %70 = vmatpush2.bf16.msra.mxu0 0
  %71 = vmatprep.subr.bf16.mxu0 0
  %72 = vmatpush2.bf16.msra.mxu0 0
  %73 = vmatprep.subr.bf16.mxu0 0
  %74 = vmatpush2.bf16.msra.mxu0 0
  %75 = vmatprep.subr.bf16.mxu0 0
  %76 = vmatpush2.bf16.msra.mxu0 0
  %77 = vmatprep.subr.bf16.mxu0 0
  %78 = vmatpush2.bf16.msra.mxu0 0
  %79 = vmatprep.subr.bf16.mxu0 0
  %80 = vmatpush2.bf16.msra.mxu0 0
  %81 = vmatprep.mubr.bf16.mxu0 0
  %82 = vmatmul.mubr.bf16.gmra.mxu0 %v44
  %v83 = vpop.f32.mrf.mxu0
  %v84 = vadd.f32 0.0, %v83
  %v85 = vpop.f32.mrf.mxu0
  %v86 = vpop.f32.mrf.mxu0
  %v87 = vadd.f32 0.0, %v86
  %v88 = vpop.f32.mrf.mxu0
  %89 = vmatprep.mubr.bf16.mxu0 0
  %90 = vmatmul.mubr.bf16.gmra.mxu0 %v47
  %v91 = vpop.f32.mrf.mxu0
  %v92 = vadd.f32 0.0, %v91
  %v93 = vpop.f32.mrf.mxu0
  %v94 = vpop.f32.mrf.mxu0
  %v95 = vadd.f32 0.0, %v94
  %v96 = vpop.f32.mrf.mxu0
  %97 = vdwg.mxu0
  %v98 = vpack.c.bf16 %v87, %v84
  %v99 = vpack.c.bf16 %v95, %v92
  %v102 = vunpack.c.l.b16 %v98
  %v103 = vunpack.c.h.b16 %v98
  %v104 = vunpack.c.l.b16 %v99
  %v105 = vunpack.c.h.b16 %v99
  %v106 = vpack.c.b16 %v102, %v102
  %v107 = vpack.c.b16 %v103, %v103
  %v108 = vpack.c.b16 %v104, %v104
  %v109 = vpack.c.b16 %v105, %v105
  %vm114 = vcmask 781312
  %115 = vst.msk [vmem:[%s2] sm:$0xf] %vm114, %v106
  %116 = vst.msk [vmem:[%s2 + $0x4] sm:$0xf] %vm114, %v107
  %117 = vst.msk [vmem:[%s2 + $0x8] sm:$0xf] %vm114, %v108
  %118 = vst.msk [vmem:[%s2 + $0xc] sm:$0xf] %vm114, %v109
  // Predicated region
  $region10: #{compressive_memory_forward.3} parent=0 // pred_check
    _
  $region11: #{compressive_memory_forward.3} parent=0 // pred_check_branch
    %120 = sbr.rel (0) target = $region13
  $region12: #{compressive_memory_forward.3} parent=0 // pred_region
    _
  $region13: #{compressive_memory_forward.3} parent=0 // pred_fallthru
    _
  // Predicated region
  $region14: #{compressive_memory_forward.3} parent=0 // pred_check
    _
  $region15: #{compressive_memory_forward.3} parent=0 // pred_check_branch
    %122 = sbr.rel (0) target = $region17
  $region16: #{compressive_memory_forward.3} parent=0 // pred_region
    _
  $region17: #{compressive_memory_forward.3} parent=0 // pred_fallthru
    _

// kernel: compressive_memory_forward.5
$region0: #{compressive_memory_forward.5}
  #allocation0 [shape = 'u32[]', space=smem, size = 0x4, offset = 0x4, fixed_abs, tag = 'smem constant byte address 0x4 - core index']
  #allocation1 [shape = 'u32[144,128]{1,0:T(1,128)}', space=vmem, size = 0x12000, scoped, tag = 'internal scratch']
  %s0 = inlined_call_operand.vmem [shape: bf16[32,32], index: 0, kind: input, shape index: {}]
  %s1 = inlined_call_operand.vmem [shape: bf16[32,32], index: 1, kind: input, shape index: {}]
  %s2 = inlined_call_operand.hbm [shape: f32[32,32], index: 2, kind: output, shape index: {}]
  %s3 = sld [smem:[#allocation0]]
  $region18: #{compressive_memory_forward.5} parent=0
    _
  %s5 = ssub.s32 1, %s3
  %s6 = scalar_select 0, %s5, %s3
  $region1: #{compressive_memory_forward.5} parent=0
    #allocation2 [shape = 'u8[16384]{0}', space=vmem, size = 0x4000, scoped, tag = 'output window, operand 0, single buffered']
    #allocation3 [shape = 's32[1]{0}', space=sflag, size = 0x4, scoped, tag = 'scoped memory for compressive_memory_forward.5']
    %7 = vsyncpa [#allocation3], 0
    // Predicated region
    $region2: #{compressive_memory_forward.5} parent=1 // pred_check
      _
    $region3: #{compressive_memory_forward.5} parent=1 // pred_check_branch
      %9 = sbr.rel (0) target = $region5
    $region4: #{compressive_memory_forward.5} parent=1 // pred_region
      _
    $region5: #{compressive_memory_forward.5} parent=1 // pred_fallthru
      _
    // Predicated region
    $region6: #{compressive_memory_forward.5} parent=1 // pred_check
      _
    $region7: #{compressive_memory_forward.5} parent=1 // pred_check_branch
      %11 = sbr.rel (0) target = $region9
    $region8: #{compressive_memory_forward.5} parent=1 // pred_region
      _
    $region9: #{compressive_memory_forward.5} parent=1 // pred_fallthru
      _
    %v13 = vld [vmem:[%s0] sm:$0xf]
    %v14 = vld [vmem:[%s0 + $0x4] sm:$0xf]
    %v15 = vld [vmem:[%s0 + $0x8] sm:$0xf]
    %v16 = vld [vmem:[%s0 + $0xc] sm:$0xf]
    %v17 = vld [vmem:[%s1] sm:$0xf]
    %v18 = vld [vmem:[%s1 + $0x4] sm:$0xf]
    %v19 = vld [vmem:[%s1 + $0x8] sm:$0xf]
    %v20 = vld [vmem:[%s1 + $0xc] sm:$0xf]
    %v25 = vunpack.c.l.b16 %v13
    %v26 = vunpack.c.l.b16 %v14
    %v27 = vunpack.c.l.b16 %v15
    %v28 = vunpack.c.l.b16 %v16
    %v29 = vpack.c.b16 %v26, %v25
    %v30 = vpack.c.b16 %v28, %v27
    %v35 = vunpack.c.l.b16 %v17
    %v36 = vunpack.c.l.b16 %v18
    %v37 = vunpack.c.l.b16 %v19
    %v38 = vunpack.c.l.b16 %v20
    %v39 = vpack.c.b16 %v36, %v35
    %v40 = vpack.c.b16 %v38, %v37
    %vm43 = vcmask 261120
    %v45 = vsel %vm43, %v29, 0
    %v48 = vsel %vm43, %v30, 0
    %50 = vmatprep.subr.bf16.mxu0 0
    %51 = vmatpush1.bf16.msra.mxu0 0
    %52 = vmatprep.subr.bf16.mxu0 0
    %53 = vmatpush1.bf16.msra.mxu0 0
    %54 = vmatprep.subr.bf16.mxu0 0
    %55 = vmatpush1.bf16.msra.mxu0 0
    %56 = vmatprep.subr.bf16.mxu0 0
    %57 = vmatpush1.bf16.msra.mxu0 0
    %58 = vmatprep.subr.bf16.mxu0 0
    %59 = vmatpush1.bf16.msra.mxu0 0
    %60 = vmatprep.subr.bf16.mxu0 0
    %61 = vmatpush1.bf16.msra.mxu0 0
    %62 = vmatprep.subr.bf16.mxu0 0
    %63 = vmatpush1.bf16.msra.mxu0 %v40
    %64 = vmatprep.subr.bf16.mxu0 0
    %65 = vmatpush1.bf16.msra.mxu0 %v39
    %66 = vmatprep.subr.bf16.mxu0 0
    %67 = vmatpush2.bf16.msra.mxu0 0
    %68 = vmatprep.subr.bf16.mxu0 0
    %69 = vmatpush2.bf16.msra.mxu0 0
    %70 = vmatprep.subr.bf16.mxu0 0
    %71 = vmatpush2.bf16.msra.mxu0 0
    %72 = vmatprep.subr.bf16.mxu0 0
    %73 = vmatpush2.bf16.msra.mxu0 0
    %74 = vmatprep.subr.bf16.mxu0 0
    %75 = vmatpush2.bf16.msra.mxu0 0
    %76 = vmatprep.subr.bf16.mxu0 0
    %77 = vmatpush2.bf16.msra.mxu0 0
    %78 = vmatprep.subr.bf16.mxu0 0
    %79 = vmatpush2.bf16.msra.mxu0 0
    %80 = vmatprep.subr.bf16.mxu0 0
    %81 = vmatpush2.bf16.msra.mxu0 0
    %82 = vmatprep.mubr.bf16.mxu0 0
    %83 = vmatmul.mubr.bf16.gmra.mxu0 %v45
    %v84 = vpop.f32.mrf.mxu0
    %v85 = vadd.f32 0.0, %v84
    %v86 = vpop.f32.mrf.mxu0
    %v87 = vpop.f32.mrf.mxu0
    %v88 = vadd.f32 0.0, %v87
    %v89 = vpop.f32.mrf.mxu0
    %90 = vmatprep.mubr.bf16.mxu0 0
    %91 = vmatmul.mubr.bf16.gmra.mxu0 %v48
    %v92 = vpop.f32.mrf.mxu0
    %v93 = vadd.f32 0.0, %v92
    %v94 = vpop.f32.mrf.mxu0
    %v95 = vpop.f32.mrf.mxu0
    %v96 = vadd.f32 0.0, %v95
    %v97 = vpop.f32.mrf.mxu0
    %98 = vdwg.mxu0
    %99 = vst.msk [vmem:[#allocation2] sm:$0xff] %vm43, %v85
    %100 = vst.msk [vmem:[#allocation2 + $0x8] sm:$0xff] %vm43, %v88
    %101 = vst.msk [vmem:[#allocation2 + $0x10] sm:$0xff] %vm43, %v93
    %102 = vst.msk [vmem:[#allocation2 + $0x18] sm:$0xff] %vm43, %v96
    // Predicated region
    $region10: #{compressive_memory_forward.5} parent=1 // pred_check
      _
    $region11: #{compressive_memory_forward.5} parent=1 // pred_check_branch
      %104 = sbr.rel (0) target = $region13
    $region12: #{compressive_memory_forward.5} parent=1 // pred_region
      %s106 = ssub.s32 512, 512
      %107 = vsyncadd [#allocation3], %s106
      %s108 = sshll.u32 [#allocation2], 4
      %s109 = int_to_ptr.vmem [resolvable:$true] %s108
      %114 = dma.vmem_to_hbm [thread:$0]  %s109, 512, %s2, [#allocation3], 128, 128, 8
    $region13: #{compressive_memory_forward.5} parent=1 // pred_fallthru
      _
    // Predicated region
    $region14: #{compressive_memory_forward.5} parent=1 // pred_check
      _
    $region15: #{compressive_memory_forward.5} parent=1 // pred_check_branch
      %116 = sbr.rel (0) target = $region17
    $region16: #{compressive_memory_forward.5} parent=1 // pred_region
      %117 = dma.done [#allocation3], 512
    $region17: #{compressive_memory_forward.5} parent=1 // pred_fallthru
      _
    %118 = vsyncpa [#allocation3], 1

// kernel: compressive_memory_forward.4
$region0: #{compressive_memory_forward.4}
  #allocation0 [shape = 'u32[]', space=smem, size = 0x4, offset = 0x4, fixed_abs, tag = 'smem constant byte address 0x4 - core index']
  #allocation1 [shape = 'u32[144,128]{1,0:T(1,128)}', space=vmem, size = 0x12000, scoped, tag = 'internal scratch']
  #allocation2 [shape = 'f32[2,16,16]{2,1,0:T(8,128)}', space=vmem, size = 0x4000, scoped, tag = 'scratch operand']
  #allocation3 [shape = 'f32[2,1,16]{2,1,0:T(1,128)}', space=vmem, size = 0x400, scoped, tag = 'scratch operand']
  %s0 = inlined_call_operand.vmem [shape: bf16[4,16,16], index: 0, kind: input, shape index: {}]
  %s1 = inlined_call_operand.vmem [shape: bf16[4,16,16], index: 1, kind: input, shape index: {}]
  %s2 = inlined_call_operand.vmem [shape: bf16[4,16,16], index: 2, kind: input, shape index: {}]
  %s3 = inlined_call_operand.vmem [shape: f32[4,1,16], index: 3, kind: input, shape index: {}]
  %s4 = inlined_call_operand.vmem [shape: bf16[4,2,8,16], index: 4, kind: output, shape index: {}]
  %s5 = sld [smem:[#allocation0]]
  $region176: #{compressive_memory_forward.4} parent=0
    _
  %s7 = ssub.s32 1, %s5
  %s8 = scalar_select 0, %s7, %s5
  $region1: #{compressive_memory_forward.4} parent=0
    #allocation4 [shape = 'u8[8192]{0}', space=vmem, size = 0x2000, scoped, tag = 'input window, operand 0']
    #allocation5 [shape = 'u8[8192]{0}', space=vmem, size = 0x2000, scoped, tag = 'input window, operand 1']
    #allocation6 [shape = 'u8[8192]{0}', space=vmem, size = 0x2000, scoped, tag = 'input window, operand 2']
    loop: start=0, step=1, limit=6
    $region2: #{compressive_memory_forward.4} parent=1 // loop_pre_header
      _
    $region3: #{compressive_memory_forward.4} parent=1 // loop_header
      %s10 = sphi 0, %s14
      %p11 = scmp.ge.s32.totalorder %s10, 6
      %s17 = sphi 0, %s29
      %s18 = sphi 0, %s25
      %s19 = sphi 0, %s17
      %s20 = sphi 0, %s18
      %s21 = sphi 0, %s19
      %s22 = sphi 0, %s20
      %s34 = sphi 0, %s36
      %s37 = sphi 0, %s34
      %s38 = sphi 0, %s37
      %s54 = sphi 0, %s38
      %s62 = sphi 0, %s64
      %s65 = sphi 0, %s62
      %s66 = sphi 0, %s65
      %s82 = sphi 0, %s66
      %s90 = sphi 0, %s92
      %s93 = sphi 0, %s90
      %s94 = sphi 0, %s93
      %s110 = sphi 0, %s94
      %s116 = sphi 0, %s118
      %s119 = sphi 0, %s116
      %s120 = sphi 0, %s119
      %s136 = sphi 0, %s120
      %s146 = sphi 0, %s148
      %s149 = sphi 0, %s146
      %s150 = sphi 0, %s149
      %s166 = sphi 0, %s150
    $region4: #{compressive_memory_forward.4} parent=1 // loop_header_branch
      %13 = sbr.rel (%p11) target = $region8
    $region5: #{compressive_memory_forward.4} parent=1 // loop_body
      %s15 = ssub.s32 %s10, 1
      %s16 = ssub.s32 %s10, 2
      %s23 = sadd.s32 1, %s18
      %p24 = scmp.ge.s32.totalorder %s23, 2
      %s25 = scalar_select %p24, 0, %s23
      %s26 = sadd.s32 1, %s17
      %s27 = scalar_select %p24, %s26, %s17
      %p28 = scmp.ge.s32.totalorder %s27, 2
      %s29 = scalar_select %p28, 0, %s27
      %s30 = ssub.s32 %s17, %s29
      %s31 = ssub.s32 %s18, %s25
      %s32 = sor.u32 %s30, %s31
      %p33 = scmp.eq.s32.totalorder %s32, 0
      %s35 = sadd.s32 %s34, 1
      %s36 = scalar_select %p33, %s34, %s35
      %p39 = pneg %p33
      %p40 = scmp.eq.s32.totalorder %s10, 3
      %p41 = por %p39, %p40
      %p42 = scmp.ne.s32.totalorder %s34, %s37
      %p43 = scmp.eq.s32.totalorder %s10, 0
      %p44 = por %p42, %p43
      %p45 = scmp.ne.s32.totalorder %s34, %s37
      %p46 = scmp.eq.s32.totalorder %s15, 3
      %p47 = por %p45, %p46
      %p48 = scmp.ne.s32.totalorder %s37, %s38
      %p49 = scmp.eq.s32.totalorder %s15, 0
      %p50 = por %p48, %p49
      %p51 = scmp.ne.s32.totalorder %s37, %s38
      %p52 = scmp.eq.s32.totalorder %s16, 3
      %p53 = por %p51, %p52
      %p55 = scmp.ne.s32.totalorder %s38, %s54
      %p56 = scmp.eq.s32.totalorder %s16, 0
      %p57 = por %p55, %p56
      %s58 = ssub.s32 %s17, %s29
      %s59 = ssub.s32 %s18, %s25
      %s60 = sor.u32 %s58, %s59
      %p61 = scmp.eq.s32.totalorder %s60, 0
      %s63 = sadd.s32 %s62, 1
      %s64 = scalar_select %p61, %s62, %s63
      %p67 = pneg %p61
      %p68 = scmp.eq.s32.totalorder %s10, 3
      %p69 = por %p67, %p68
      %p70 = scmp.ne.s32.totalorder %s62, %s65
      %p71 = scmp.eq.s32.totalorder %s10, 0
      %p72 = por %p70, %p71
      %p73 = scmp.ne.s32.totalorder %s62, %s65
      %p74 = scmp.eq.s32.totalorder %s15, 3
      %p75 = por %p73, %p74
      %p76 = scmp.ne.s32.totalorder %s65, %s66
      %p77 = scmp.eq.s32.totalorder %s15, 0
      %p78 = por %p76, %p77
      %p79 = scmp.ne.s32.totalorder %s65, %s66
      %p80 = scmp.eq.s32.totalorder %s16, 3
      %p81 = por %p79, %p80
      %p83 = scmp.ne.s32.totalorder %s66, %s82
      %p84 = scmp.eq.s32.totalorder %s16, 0
      %p85 = por %p83, %p84
      %s86 = ssub.s32 %s17, %s29
      %s87 = ssub.s32 %s18, %s25
      %s88 = sor.u32 %s86, %s87
      %p89 = scmp.eq.s32.totalorder %s88, 0
      %s91 = sadd.s32 %s90, 1
      %s92 = scalar_select %p89, %s90, %s91
      %p95 = pneg %p89
      %p96 = scmp.eq.s32.totalorder %s10, 3
      %p97 = por %p95, %p96
      %p98 = scmp.ne.s32.totalorder %s90, %s93
      %p99 = scmp.eq.s32.totalorder %s10, 0
      %p100 = por %p98, %p99
      %p101 = scmp.ne.s32.totalorder %s90, %s93
      %p102 = scmp.eq.s32.totalorder %s15, 3
      %p103 = por %p101, %p102
      %p104 = scmp.ne.s32.totalorder %s93, %s94
      %p105 = scmp.eq.s32.totalorder %s15, 0
      %p106 = por %p104, %p105
      %p107 = scmp.ne.s32.totalorder %s93, %s94
      %p108 = scmp.eq.s32.totalorder %s16, 3
      %p109 = por %p107, %p108
      %p111 = scmp.ne.s32.totalorder %s94, %s110
      %p112 = scmp.eq.s32.totalorder %s16, 0
      %p113 = por %p111, %p112
      %s114 = ssub.s32 %s17, %s29
      %p115 = scmp.eq.s32.totalorder %s114, 0
      %s117 = sadd.s32 %s116, 1
      %s118 = scalar_select %p115, %s116, %s117
      %p121 = pneg %p115
      %p122 = scmp.eq.s32.totalorder %s10, 3
      %p123 = por %p121, %p122
      %p124 = scmp.ne.s32.totalorder %s116, %s119
      %p125 = scmp.eq.s32.totalorder %s10, 0
      %p126 = por %p124, %p125
      %p127 = scmp.ne.s32.totalorder %s116, %s119
      %p128 = scmp.eq.s32.totalorder %s15, 3
      %p129 = por %p127, %p128
      %p130 = scmp.ne.s32.totalorder %s119, %s120
      %p131 = scmp.eq.s32.totalorder %s15, 0
      %p132 = por %p130, %p131
      %p133 = scmp.ne.s32.totalorder %s119, %s120
      %p134 = scmp.eq.s32.totalorder %s16, 3
      %p135 = por %p133, %p134
      %p137 = scmp.ne.s32.totalorder %s120, %s136
      %p138 = scmp.eq.s32.totalorder %s16, 0
      %p139 = por %p137, %p138
      %s140 = smul.u32 %s17, 2
      %s141 = sadd.s32 %s140, %s18
      %s142 = smul.u32 %s29, 2
      %s143 = sadd.s32 %s142, %s25
      %s144 = ssub.s32 %s141, %s143
      %p145 = scmp.eq.s32.totalorder %s144, 0
      %s147 = sadd.s32 %s146, 1
      %s148 = scalar_select %p145, %s146, %s147
      %p151 = pneg %p145
      %p152 = scmp.eq.s32.totalorder %s10, 3
      %p153 = por %p151, %p152
      %p154 = scmp.ne.s32.totalorder %s146, %s149
      %p155 = scmp.eq.s32.totalorder %s10, 0
      %p156 = por %p154, %p155
      %p157 = scmp.ne.s32.totalorder %s146, %s149
      %p158 = scmp.eq.s32.totalorder %s15, 3
      %p159 = por %p157, %p158
      %p160 = scmp.ne.s32.totalorder %s149, %s150
      %p161 = scmp.eq.s32.totalorder %s15, 0
      %p162 = por %p160, %p161
      %p163 = scmp.ne.s32.totalorder %s149, %s150
      %p164 = scmp.eq.s32.totalorder %s16, 3
      %p165 = por %p163, %p164
      %p167 = scmp.ne.s32.totalorder %s150, %s166
      %p168 = scmp.eq.s32.totalorder %s16, 0
      %p169 = por %p167, %p168
      %p170 = scmp.le.s32.totalorder 1, %s10
      %p171 = scmp.lt.s32.totalorder %s10, 5
      %p172 = pnand %p170, %p171
      %p173 = pneg %p172
      // Predicated region
      $region9: #{compressive_memory_forward.4} parent=5 // pred_check
        _
      $region10: #{compressive_memory_forward.4} parent=5 // pred_check_branch
        %175 = sbr.rel (%p172) target = $region12
      $region11: #{compressive_memory_forward.4} parent=5 // pred_region
        %s176 = ssub.s32 %s10, 1
      $region12: #{compressive_memory_forward.4} parent=5 // pred_fallthru
        _
      %p177 = scmp.lt.s32.totalorder %s10, 4
      // Predicated region
      $region13: #{compressive_memory_forward.4} parent=5 // pred_check
        %p178 = pneg %p177
      $region14: #{compressive_memory_forward.4} parent=5 // pred_check_branch
        %180 = sbr.rel (%p178) target = $region16
      $region15: #{compressive_memory_forward.4} parent=5 // pred_region
        // Predicated region
        $region17: #{compressive_memory_forward.4} parent=15 // pred_check
          %p181 = pneg %p44
        $region18: #{compressive_memory_forward.4} parent=15 // pred_check_branch
          %183 = sbr.rel (%p181) target = $region20
        $region19: #{compressive_memory_forward.4} parent=15 // pred_region
          %s184 = sand.u32 %s34, 1
          %s185 = sand.u32 %s34, 1
          %s186 = smul.addr %s185, 8
          %s187 = scalar_lea.vmem [#allocation4], %s186
          %s188 = smul.u32 2, %s17
          %s189 = smul.addr %s188, 2
          %s190 = sadd.s32 %s18, %s189
          %s191 = smul.addr %s190, 4
          %s192 = scalar_lea.vmem %s0, %s191
          // Predicated region
          $region21: #{compressive_memory_forward.4} parent=19 // pred_check
            _
          $region22: #{compressive_memory_forward.4} parent=19 // pred_check_branch
            %194 = sbr.rel (0) target = $region24
          $region23: #{compressive_memory_forward.4} parent=19 // pred_region
            // Predicated region
            $region25: #{compressive_memory_forward.4} parent=23 // pred_check
              _
            $region26: #{compressive_memory_forward.4} parent=23 // pred_check_branch
              %196 = sbr.rel target = $region28
            $region27: #{compressive_memory_forward.4} parent=23 // pred_region
              // Predicated region
              $region40: #{compressive_memory_forward.4} parent=27 // pred_check
                _
              $region41: #{compressive_memory_forward.4} parent=27 // pred_check_branch
                %214 = sbr.rel (0) target = $region43
              $region42: #{compressive_memory_forward.4} parent=27 // pred_region
                loop: start=0, step=1, limit=1
                $region44: #{compressive_memory_forward.4} parent=42 // loop_pre_header
                  _
                $region45: #{compressive_memory_forward.4} parent=42 // loop_header
                  %s216 = sphi 0, %s220
                  %p217 = scmp.ge.s32.totalorder %s216, 1
                  %s221 = sphi %s192, %s192
                  %s222 = sphi %s187, %s187
                $region46: #{compressive_memory_forward.4} parent=42 // loop_header_branch
                  %219 = sbr.rel (%p217) target = $region50
                $region47: #{compressive_memory_forward.4} parent=42 // loop_body
                  _
                $region48: #{compressive_memory_forward.4} parent=42 // loop_footer
                  %s220 = sadd.s32 1, %s216
                $region49: #{compressive_memory_forward.4} parent=42 // loop_footer_branch
                  %215 = sbr.rel target = $region45
                $region50: #{compressive_memory_forward.4} parent=42 // loop_exit
                  _
                %s224 = ssub.s32 16, 1
                loop: start=0, step=1, limit=1
                $region51: #{compressive_memory_forward.4} parent=42 // loop_pre_header
                  _
                $region52: #{compressive_memory_forward.4} parent=42 // loop_header
                  %s226 = sphi 0, %s230
                  %p227 = scmp.ge.s32.totalorder %s226, 1
                  %s231 = sphi %s192, %s192
                  %s232 = sphi %s187, %s187
                $region53: #{compressive_memory_forward.4} parent=42 // loop_header_branch
                  %229 = sbr.rel (%p227) target = $region57
                $region54: #{compressive_memory_forward.4} parent=42 // loop_body
                  %v233 = vld [vmem:[%s231] sm:%s224]
                  %234 = vst [vmem:[%s232] sm:%s224] %v233
                  %v235 = vld [vmem:[%s231 + $0x8] sm:%s224]
                  %236 = vst [vmem:[%s232 + $0x4] sm:%s224] %v235
                $region55: #{compressive_memory_forward.4} parent=42 // loop_footer
                  %s230 = sadd.s32 1, %s226
                $region56: #{compressive_memory_forward.4} parent=42 // loop_footer_branch
                  %225 = sbr.rel target = $region52
                $region57: #{compressive_memory_forward.4} parent=42 // loop_exit
                  _
              $region43: #{compressive_memory_forward.4} parent=27 // pred_fallthru
                _
            $region28: #{compressive_memory_forward.4} parent=23 // pred_fallthru
              _
            // Predicated region
            $region29: #{compressive_memory_forward.4} parent=23 // pred_check
              _
            $region30: #{compressive_memory_forward.4} parent=23 // pred_check_branch
              %198 = sbr.rel (0) target = $region32
            $region31: #{compressive_memory_forward.4} parent=23 // pred_region
              %s200 = ssub.s32 16, 1
              loop: start=0, step=1, limit=1
              $region33: #{compressive_memory_forward.4} parent=31 // loop_pre_header
                _
              $region34: #{compressive_memory_forward.4} parent=31 // loop_header
                %s202 = sphi 0, %s206
                %p203 = scmp.ge.s32.totalorder %s202, 1
                %s207 = sphi %s192, %s192
                %s208 = sphi %s187, %s187
              $region35: #{compressive_memory_forward.4} parent=31 // loop_header_branch
                %205 = sbr.rel (%p203) target = $region39
              $region36: #{compressive_memory_forward.4} parent=31 // loop_body
                %v209 = vld [vmem:[%s207] sm:%s200]
                %210 = vst [vmem:[%s208] sm:%s200] %v209
                %v211 = vld [vmem:[%s207 + $0x8] sm:%s200]
                %212 = vst [vmem:[%s208 + $0x4] sm:%s200] %v211
              $region37: #{compressive_memory_forward.4} parent=31 // loop_footer
                %s206 = sadd.s32 1, %s202
              $region38: #{compressive_memory_forward.4} parent=31 // loop_footer_branch
                %201 = sbr.rel target = $region34
              $region39: #{compressive_memory_forward.4} parent=31 // loop_exit
                _
            $region32: #{compressive_memory_forward.4} parent=23 // pred_fallthru
              _
          $region24: #{compressive_memory_forward.4} parent=19 // pred_fallthru
            _
          %237 = vnop
        $region20: #{compressive_memory_forward.4} parent=15 // pred_fallthru
          _
        // Predicated region
        $region58: #{compressive_memory_forward.4} parent=15 // pred_check
          %p238 = pneg %p72
        $region59: #{compressive_memory_forward.4} parent=15 // pred_check_branch
          %240 = sbr.rel (%p238) target = $region61
        $region60: #{compressive_memory_forward.4} parent=15 // pred_region
          %s241 = sand.u32 %s62, 1
          %s242 = sand.u32 %s62, 1
          %s243 = smul.addr %s242, 8
          %s244 = scalar_lea.vmem [#allocation5], %s243
          %s245 = smul.u32 2, %s17
          %s246 = smul.addr %s245, 2
          %s247 = sadd.s32 %s18, %s246
          %s248 = smul.addr %s247, 4
          %s249 = scalar_lea.vmem %s1, %s248
          // Predicated region
          $region62: #{compressive_memory_forward.4} parent=60 // pred_check
            _
          $region63: #{compressive_memory_forward.4} parent=60 // pred_check_branch
            %251 = sbr.rel (0) target = $region65
          $region64: #{compressive_memory_forward.4} parent=60 // pred_region
            // Predicated region
            $region66: #{compressive_memory_forward.4} parent=64 // pred_check
              _
            $region67: #{compressive_memory_forward.4} parent=64 // pred_check_branch
              %253 = sbr.rel target = $region69
            $region68: #{compressive_memory_forward.4} parent=64 // pred_region
              // Predicated region
              $region81: #{compressive_memory_forward.4} parent=68 // pred_check
                _
              $region82: #{compressive_memory_forward.4} parent=68 // pred_check_branch
                %271 = sbr.rel (0) target = $region84
              $region83: #{compressive_memory_forward.4} parent=68 // pred_region
                loop: start=0, step=1, limit=1
                $region85: #{compressive_memory_forward.4} parent=83 // loop_pre_header
                  _
                $region86: #{compressive_memory_forward.4} parent=83 // loop_header
                  %s273 = sphi 0, %s277
                  %p274 = scmp.ge.s32.totalorder %s273, 1
                  %s278 = sphi %s249, %s249
                  %s279 = sphi %s244, %s244
                $region87: #{compressive_memory_forward.4} parent=83 // loop_header_branch
                  %276 = sbr.rel (%p274) target = $region91
                $region88: #{compressive_memory_forward.4} parent=83 // loop_body
                  _
                $region89: #{compressive_memory_forward.4} parent=83 // loop_footer
                  %s277 = sadd.s32 1, %s273
                $region90: #{compressive_memory_forward.4} parent=83 // loop_footer_branch
                  %272 = sbr.rel target = $region86
                $region91: #{compressive_memory_forward.4} parent=83 // loop_exit
                  _
                %s281 = ssub.s32 16, 1
                loop: start=0, step=1, limit=1
                $region92: #{compressive_memory_forward.4} parent=83 // loop_pre_header
                  _
                $region93: #{compressive_memory_forward.4} parent=83 // loop_header
                  %s283 = sphi 0, %s287
                  %p284 = scmp.ge.s32.totalorder %s283, 1
                  %s288 = sphi %s249, %s249
                  %s289 = sphi %s244, %s244
                $region94: #{compressive_memory_forward.4} parent=83 // loop_header_branch
                  %286 = sbr.rel (%p284) target = $region98
                $region95: #{compressive_memory_forward.4} parent=83 // loop_body
                  %v290 = vld [vmem:[%s288] sm:%s281]
                  %291 = vst [vmem:[%s289] sm:%s281] %v290
                  %v292 = vld [vmem:[%s288 + $0x8] sm:%s281]
                  %293 = vst [vmem:[%s289 + $0x4] sm:%s281] %v292
                $region96: #{compressive_memory_forward.4} parent=83 // loop_footer
                  %s287 = sadd.s32 1, %s283
                $region97: #{compressive_memory_forward.4} parent=83 // loop_footer_branch
                  %282 = sbr.rel target = $region93
                $region98: #{compressive_memory_forward.4} parent=83 // loop_exit
                  _
              $region84: #{compressive_memory_forward.4} parent=68 // pred_fallthru
                _
            $region69: #{compressive_memory_forward.4} parent=64 // pred_fallthru
              _
            // Predicated region
            $region70: #{compressive_memory_forward.4} parent=64 // pred_check
              _
            $region71: #{compressive_memory_forward.4} parent=64 // pred_check_branch
              %255 = sbr.rel (0) target = $region73
            $region72: #{compressive_memory_forward.4} parent=64 // pred_region
              %s257 = ssub.s32 16, 1
              loop: start=0, step=1, limit=1
              $region74: #{compressive_memory_forward.4} parent=72 // loop_pre_header
                _
              $region75: #{compressive_memory_forward.4} parent=72 // loop_header
                %s259 = sphi 0, %s263
                %p260 = scmp.ge.s32.totalorder %s259, 1
                %s264 = sphi %s249, %s249
                %s265 = sphi %s244, %s244
              $region76: #{compressive_memory_forward.4} parent=72 // loop_header_branch
                %262 = sbr.rel (%p260) target = $region80
              $region77: #{compressive_memory_forward.4} parent=72 // loop_body
                %v266 = vld [vmem:[%s264] sm:%s257]
                %267 = vst [vmem:[%s265] sm:%s257] %v266
                %v268 = vld [vmem:[%s264 + $0x8] sm:%s257]
                %269 = vst [vmem:[%s265 + $0x4] sm:%s257] %v268
              $region78: #{compressive_memory_forward.4} parent=72 // loop_footer
                %s263 = sadd.s32 1, %s259
              $region79: #{compressive_memory_forward.4} parent=72 // loop_footer_branch
                %258 = sbr.rel target = $region75
              $region80: #{compressive_memory_forward.4} parent=72 // loop_exit
                _
            $region73: #{compressive_memory_forward.4} parent=64 // pred_fallthru
              _
          $region65: #{compressive_memory_forward.4} parent=60 // pred_fallthru
            _
          %294 = vnop
        $region61: #{compressive_memory_forward.4} parent=15 // pred_fallthru
          _
        // Predicated region
        $region99: #{compressive_memory_forward.4} parent=15 // pred_check
          %p295 = pneg %p100
        $region100: #{compressive_memory_forward.4} parent=15 // pred_check_branch
          %297 = sbr.rel (%p295) target = $region102
        $region101: #{compressive_memory_forward.4} parent=15 // pred_region
          %s298 = sand.u32 %s90, 1
          %s299 = sand.u32 %s90, 1
          %s300 = smul.addr %s299, 8
          %s301 = scalar_lea.vmem [#allocation6], %s300
          %s302 = smul.u32 2, %s17
          %s303 = smul.addr %s302, 2
          %s304 = sadd.s32 %s18, %s303
          %s305 = smul.addr %s304, 4
          %s306 = scalar_lea.vmem %s2, %s305
          // Predicated region
          $region103: #{compressive_memory_forward.4} parent=101 // pred_check
            _
          $region104: #{compressive_memory_forward.4} parent=101 // pred_check_branch
            %308 = sbr.rel (0) target = $region106
          $region105: #{compressive_memory_forward.4} parent=101 // pred_region
            // Predicated region
            $region107: #{compressive_memory_forward.4} parent=105 // pred_check
              _
            $region108: #{compressive_memory_forward.4} parent=105 // pred_check_branch
              %310 = sbr.rel target = $region110
            $region109: #{compressive_memory_forward.4} parent=105 // pred_region
              // Predicated region
              $region122: #{compressive_memory_forward.4} parent=109 // pred_check
                _
              $region123: #{compressive_memory_forward.4} parent=109 // pred_check_branch
                %328 = sbr.rel (0) target = $region125
              $region124: #{compressive_memory_forward.4} parent=109 // pred_region
                loop: start=0, step=1, limit=1
                $region126: #{compressive_memory_forward.4} parent=124 // loop_pre_header
                  _
                $region127: #{compressive_memory_forward.4} parent=124 // loop_header
                  %s330 = sphi 0, %s334
                  %p331 = scmp.ge.s32.totalorder %s330, 1
                  %s335 = sphi %s306, %s306
                  %s336 = sphi %s301, %s301
                $region128: #{compressive_memory_forward.4} parent=124 // loop_header_branch
                  %333 = sbr.rel (%p331) target = $region132
                $region129: #{compressive_memory_forward.4} parent=124 // loop_body
                  _
                $region130: #{compressive_memory_forward.4} parent=124 // loop_footer
                  %s334 = sadd.s32 1, %s330
                $region131: #{compressive_memory_forward.4} parent=124 // loop_footer_branch
                  %329 = sbr.rel target = $region127
                $region132: #{compressive_memory_forward.4} parent=124 // loop_exit
                  _
                %s338 = ssub.s32 16, 1
                loop: start=0, step=1, limit=1
                $region133: #{compressive_memory_forward.4} parent=124 // loop_pre_header
                  _
                $region134: #{compressive_memory_forward.4} parent=124 // loop_header
                  %s340 = sphi 0, %s344
                  %p341 = scmp.ge.s32.totalorder %s340, 1
                  %s345 = sphi %s306, %s306
                  %s346 = sphi %s301, %s301
                $region135: #{compressive_memory_forward.4} parent=124 // loop_header_branch
                  %343 = sbr.rel (%p341) target = $region139
                $region136: #{compressive_memory_forward.4} parent=124 // loop_body
                  %v347 = vld [vmem:[%s345] sm:%s338]
                  %348 = vst [vmem:[%s346] sm:%s338] %v347
                  %v349 = vld [vmem:[%s345 + $0x8] sm:%s338]
                  %350 = vst [vmem:[%s346 + $0x4] sm:%s338] %v349
                $region137: #{compressive_memory_forward.4} parent=124 // loop_footer
                  %s344 = sadd.s32 1, %s340
                $region138: #{compressive_memory_forward.4} parent=124 // loop_footer_branch
                  %339 = sbr.rel target = $region134
                $region139: #{compressive_memory_forward.4} parent=124 // loop_exit
                  _
              $region125: #{compressive_memory_forward.4} parent=109 // pred_fallthru
                _
            $region110: #{compressive_memory_forward.4} parent=105 // pred_fallthru
              _
            // Predicated region
            $region111: #{compressive_memory_forward.4} parent=105 // pred_check
              _
            $region112: #{compressive_memory_forward.4} parent=105 // pred_check_branch
              %312 = sbr.rel (0) target = $region114
            $region113: #{compressive_memory_forward.4} parent=105 // pred_region
              %s314 = ssub.s32 16, 1
              loop: start=0, step=1, limit=1
              $region115: #{compressive_memory_forward.4} parent=113 // loop_pre_header
                _
              $region116: #{compressive_memory_forward.4} parent=113 // loop_header
                %s316 = sphi 0, %s320
                %p317 = scmp.ge.s32.totalorder %s316, 1
                %s321 = sphi %s306, %s306
                %s322 = sphi %s301, %s301
              $region117: #{compressive_memory_forward.4} parent=113 // loop_header_branch
                %319 = sbr.rel (%p317) target = $region121
              $region118: #{compressive_memory_forward.4} parent=113 // loop_body
                %v323 = vld [vmem:[%s321] sm:%s314]
                %324 = vst [vmem:[%s322] sm:%s314] %v323
                %v325 = vld [vmem:[%s321 + $0x8] sm:%s314]
                %326 = vst [vmem:[%s322 + $0x4] sm:%s314] %v325
              $region119: #{compressive_memory_forward.4} parent=113 // loop_footer
                %s320 = sadd.s32 1, %s316
              $region120: #{compressive_memory_forward.4} parent=113 // loop_footer_branch
                %315 = sbr.rel target = $region116
              $region121: #{compressive_memory_forward.4} parent=113 // loop_exit
                _
            $region114: #{compressive_memory_forward.4} parent=105 // pred_fallthru
              _
          $region106: #{compressive_memory_forward.4} parent=101 // pred_fallthru
            _
          %351 = vnop
        $region102: #{compressive_memory_forward.4} parent=15 // pred_fallthru
          _
        // Predicated region
        $region140: #{compressive_memory_forward.4} parent=15 // pred_check
          %p352 = pneg %p126
        $region141: #{compressive_memory_forward.4} parent=15 // pred_check_branch
          %354 = sbr.rel (%p352) target = $region143
        $region142: #{compressive_memory_forward.4} parent=15 // pred_region
          %s355 = smul.u32 2, %s17
          %p356 = scmp.lt.s32.totalorder %s355, 3
          %s357 = scalar_select %p356, %s355, 3
          %s358 = scalar_lea.vmem %s3, %s357
          %s359 = smul.u32 2, %s17
        $region143: #{compressive_memory_forward.4} parent=15 // pred_fallthru
          _
      $region16: #{compressive_memory_forward.4} parent=5 // pred_fallthru
        _
      %p360 = scmp.le.s32.totalorder 1, %s10
      %p361 = scmp.lt.s32.totalorder %s10, 5
      %p362 = pnand %p360, %p361
      %p363 = pneg %p362
      // Predicated region
      $region144: #{compressive_memory_forward.4} parent=5 // pred_check
        _
      $region145: #{compressive_memory_forward.4} parent=5 // pred_check_branch
        %365 = sbr.rel (%p362) target = $region147
      $region146: #{compressive_memory_forward.4} parent=5 // pred_region
        %s366 = ssub.s32 %s10, 1
        %s367 = sand.u32 %s37, 1
        %s368 = sand.u32 %s37, 1
        %s369 = smul.addr %s368, 8
        %s370 = scalar_lea.vmem [#allocation4], %s369
        // Predicated region
        $region148: #{compressive_memory_forward.4} parent=146 // pred_check
          %p371 = pneg %p50
        $region149: #{compressive_memory_forward.4} parent=146 // pred_check_branch
          %373 = sbr.rel (%p371) target = $region151
        $region150: #{compressive_memory_forward.4} parent=146 // pred_region
          _
        $region151: #{compressive_memory_forward.4} parent=146 // pred_fallthru
          _
        %s374 = sand.u32 %s65, 1
        %s375 = sand.u32 %s65, 1
        %s376 = smul.addr %s375, 8
        %s377 = scalar_lea.vmem [#allocation5], %s376
        // Predicated region
        $region152: #{compressive_memory_forward.4} parent=146 // pred_check
          %p378 = pneg %p78
        $region153: #{compressive_memory_forward.4} parent=146 // pred_check_branch
          %380 = sbr.rel (%p378) target = $region155
        $region154: #{compressive_memory_forward.4} parent=146 // pred_region
          _
        $region155: #{compressive_memory_forward.4} parent=146 // pred_fallthru
          _
        %s381 = sand.u32 %s93, 1
        %s382 = sand.u32 %s93, 1
        %s383 = smul.addr %s382, 8
        %s384 = scalar_lea.vmem [#allocation6], %s383
        // Predicated region
        $region156: #{compressive_memory_forward.4} parent=146 // pred_check
          %p385 = pneg %p106
        $region157: #{compressive_memory_forward.4} parent=146 // pred_check_branch
          %387 = sbr.rel (%p385) target = $region159
        $region158: #{compressive_memory_forward.4} parent=146 // pred_region
          _
        $region159: #{compressive_memory_forward.4} parent=146 // pred_fallthru
          _
        %s388 = sand.u32 %s37, 1
        %s389 = sand.u32 %s37, 1
        %s390 = smul.addr %s389, 8
        %s391 = scalar_lea.vmem [#allocation4], %s390
        %p392 = pneg %p50
        %p393 = pneg %p47
        %s394 = sand.u32 %s65, 1
        %s395 = sand.u32 %s65, 1
        %s396 = smul.addr %s395, 8
        %s397 = scalar_lea.vmem [#allocation5], %s396
        %p398 = pneg %p78
        %p399 = pneg %p75
        %s400 = sand.u32 %s93, 1
        %s401 = sand.u32 %s93, 1
        %s402 = smul.addr %s401, 8
        %s403 = scalar_lea.vmem [#allocation6], %s402
        %p404 = pneg %p106
        %p405 = pneg %p103
        %s406 = smul.u32 2, %s19
        %p407 = scmp.lt.s32.totalorder %s406, 3
        %s408 = scalar_select %p407, %s406, 3
        %s409 = scalar_lea.vmem %s3, %s408
        %p410 = pneg %p132
        %p411 = pneg %p129
        %p412 = pneg %p162
        %p413 = pneg %p159
        %s414 = smul.u32 %s19, 2
        %s415 = sadd.s32 %s414, %s20
        %p416 = scmp.lt.s32.totalorder %s415, 3
        %s417 = scalar_select %p416, %s415, 3
        %s418 = smul.addr %s417, 2
        %s419 = smul.addr %s418, 4
        %s420 = scalar_lea.vmem %s4, %s419
        %s421 = smul.u32 2, %s19
        %s422 = smul.u32 2, %s19
        %s423 = smul.u32 2, %s19
        %s424 = smul.u32 2, %s19
        %p425 = scmp.lt.s32.totalorder %s424, 3
        %s426 = scalar_select %p425, %s424, 3
        %s427 = scalar_lea.vmem %s3, %s426
        %s428 = smul.u32 2, %s19
        %s429 = smul.u32 %s19, 2
        %s430 = sadd.s32 %s429, %s20
        %p431 = scmp.lt.s32.totalorder %s430, 3
        %s432 = scalar_select %p431, %s430, 3
        %s433 = smul.addr %s432, 2
        %s434 = smul.addr %s433, 4
        %s435 = scalar_lea.vmem %s4, %s434
        %s436 = smul.u32 %s19, 2
        %s437 = sadd.s32 %s436, %s20
        %p439 = scmp.eq.s32.totalorder %s20, 0
        // Predicated region
        $region160: #{compressive_memory_forward.4} parent=146 // pred_check
          %p440 = pneg %p439
        $region161: #{compressive_memory_forward.4} parent=146 // pred_check_branch
          %442 = sbr.rel (%p440) target = $region163
        $region162: #{compressive_memory_forward.4} parent=146 // pred_region
          %vm443 = vcmask 130048
          %444 = vst.msk [vmem:[#allocation2] sm:$0xff] %vm443, 0.0
          %445 = vst.msk [vmem:[#allocation2 + $0x8] sm:$0xff] %vm443, 0.0
          %446 = vst.msk [vmem:[#allocation2 + $0x10] sm:$0xff] %vm443, 0.0
          %447 = vst.msk [vmem:[#allocation2 + $0x18] sm:$0xff] %vm443, 0.0
          %vm448 = vcmask 122880
          %449 = vst.msk [vmem:[#allocation3] sm:$0x1] %vm448, 0.0625
          %450 = vst.msk [vmem:[#allocation3 + $0x1] sm:$0x1] %vm448, 0.0625
        $region163: #{compressive_memory_forward.4} parent=146 // pred_fallthru
          _
        %v451 = vld [vmem:[%s370] sm:$0xf]
        %v452 = vld [vmem:[%s370 + $0x4] sm:$0xf]
        %v453 = vunpack.c.l.bf16 %v451
        %v454 = vunpack.c.l.bf16 %v452
        %v455 = vld [vmem:[%s377] sm:$0xf]
        %v456 = vld [vmem:[%s377 + $0x4] sm:$0xf]
        %v457 = vunpack.c.l.bf16 %v455
        %v458 = vunpack.c.l.bf16 %v456
        %v459 = vld [vmem:[%s384] sm:$0xf]
        %v460 = vld [vmem:[%s384 + $0x4] sm:$0xf]
        %v461 = vld [vmem:[#allocation2] sm:$0xff]
        %v462 = vld [vmem:[#allocation2 + $0x8] sm:$0xff]
        %v463 = vld [vmem:[#allocation2 + $0x10] sm:$0xff]
        %v464 = vld [vmem:[#allocation2 + $0x18] sm:$0xff]
        %v465 = vld [vmem:[#allocation3] sm:$0x1]
        %v466 = vld [vmem:[#allocation3 + $0x1] sm:$0x1]
        %vm467 = vcmp.gt.f32.partialorder %v453, 0.0
        %vm468 = vcmp.gt.f32.partialorder %v454, 0.0
        %v469 = vadd.f32 %v453, 1.0
        %v470 = vadd.f32 %v454, 1.0
        %v471 = vmin.f32 %v453, 0.0
        %v472 = vmin.f32 %v454, 0.0
        %v473 = vmul.f32 %v471, 1.442695
        %v474 = vpow.pop %v473
        %v475 = vmul.f32 %v472, 1.442695
        %v476 = vpow.pop %v475
        %v477 = vsel %vm467, %v469, %v474
        %v478 = vsel %vm468, %v470, %v476
        %vm479 = vcmp.gt.f32.partialorder %v457, 0.0
        %vm480 = vcmp.gt.f32.partialorder %v458, 0.0
        %v481 = vadd.f32 %v457, 1.0
        %v482 = vadd.f32 %v458, 1.0
        %v483 = vmin.f32 %v457, 0.0
        %v484 = vmin.f32 %v458, 0.0
        %v485 = vmul.f32 %v483, 1.442695
        %v486 = vpow.pop %v485
        %v487 = vmul.f32 %v484, 1.442695
        %v488 = vpow.pop %v487
        %v489 = vsel %vm479, %v481, %v486
        %v490 = vsel %vm480, %v482, %v488
        %v491 = vmul.f32 %v453, 0.25
        %v492 = vmul.f32 %v454, 0.25
        %v493 = vpack.c.bf16 %v491, %v491
        %v494 = vpack.c.bf16 %v492, %v492
        %vm495 = vcmask 130048
        %v497 = vsel %vm495, %v493, 0
        %v500 = vsel %vm495, %v455, 0
        %502 = vmatprep.subr.bf16.mxu0 0
        %503 = vmatpush1.bf16.xpose.msra.mxu0 0
        %504 = vmatprep.subr.bf16.mxu0 0
        %505 = vmatpush1.bf16.xpose.msra.mxu0 0
        %506 = vmatprep.subr.bf16.mxu0 0
        %507 = vmatpush1.bf16.xpose.msra.mxu0 0
        %508 = vmatprep.subr.bf16.mxu0 0
        %509 = vmatpush1.bf16.xpose.msra.mxu0 0
        %510 = vmatprep.subr.bf16.mxu0 0
        %511 = vmatpush1.bf16.xpose.msra.mxu0 0
        %512 = vmatprep.subr.bf16.mxu0 0
        %513 = vmatpush1.bf16.xpose.msra.mxu0 0
        %514 = vmatprep.subr.bf16.mxu0 0
        %515 = vmatpush1.bf16.xpose.msra.mxu0 0
        %516 = vmatprep.subr.bf16.mxu0 0
        %517 = vmatpush1.bf16.xpose.msra.mxu0 %v500
        %518 = vmatprep.subr.bf16.mxu0 0
        %519 = vmatpush2.bf16.xpose.msra.mxu0 0
        %520 = vmatprep.subr.bf16.mxu0 0
        %521 = vmatpush2.bf16.xpose.msra.mxu0 0
        %522 = vmatprep.subr.bf16.mxu0 0
        %523 = vmatpush2.bf16.xpose.msra.mxu0 0
        %524 = vmatprep.subr.bf16.mxu0 0
        %525 = vmatpush2.bf16.xpose.msra.mxu0 0
        %526 = vmatprep.subr.bf16.mxu0 0
        %527 = vmatpush2.bf16.xpose.msra.mxu0 0
        %528 = vmatprep.subr.bf16.mxu0 0
        %529 = vmatpush2.bf16.xpose.msra.mxu0 0
        %530 = vmatprep.subr.bf16.mxu0 0
        %531 = vmatpush2.bf16.xpose.msra.mxu0 0
        %532 = vmatprep.subr.bf16.mxu0 0
        %533 = vmatpush2.bf16.xpose.msra.mxu0 0
        %534 = vmatprep.mubr.bf16.mxu0 0
        %535 = vmatmul.mubr.bf16.gmra.mxu0 %v497
        %v536 = vpop.f32.mrf.mxu0
        %v537 = vadd.f32 0.0, %v536
        %v538 = vpop.f32.mrf.mxu0
        %v539 = vpop.f32.mrf.mxu0
        %v540 = vpop.f32.mrf.mxu0
        %541 = vdwg.mxu0
        %v543 = vsel %vm495, %v494, 0
        %v546 = vsel %vm495, %v456, 0
        %548 = vmatprep.subr.bf16.mxu0 0
        %549 = vmatpush1.bf16.xpose.msra.mxu0 0
        %550 = vmatprep.subr.bf16.mxu0 0
        %551 = vmatpush1.bf16.xpose.msra.mxu0 0
        %552 = vmatprep.subr.bf16.mxu0 0
        %553 = vmatpush1.bf16.xpose.msra.mxu0 0
        %554 = vmatprep.subr.bf16.mxu0 0
        %555 = vmatpush1.bf16.xpose.msra.mxu0 0
        %556 = vmatprep.subr.bf16.mxu0 0
        %557 = vmatpush1.bf16.xpose.msra.mxu0 0
        %558 = vmatprep.subr.bf16.mxu0 0
        %559 = vmatpush1.bf16.xpose.msra.mxu0 0
        %560 = vmatprep.subr.bf16.mxu0 0
        %561 = vmatpush1.bf16.xpose.msra.mxu0 0
        %562 = vmatprep.subr.bf16.mxu0 0
        %563 = vmatpush1.bf16.xpose.msra.mxu0 %v546
        %564 = vmatprep.subr.bf16.mxu0 0
        %565 = vmatpush2.bf16.xpose.msra.mxu0 0
        %566 = vmatprep.subr.bf16.mxu0 0
        %567 = vmatpush2.bf16.xpose.msra.mxu0 0
        %568 = vmatprep.subr.bf16.mxu0 0
        %569 = vmatpush2.bf16.xpose.msra.mxu0 0
        %570 = vmatprep.subr.bf16.mxu0 0
        %571 = vmatpush2.bf16.xpose.msra.mxu0 0
        %572 = vmatprep.subr.bf16.mxu0 0
        %573 = vmatpush2.bf16.xpose.msra.mxu0 0
        %574 = vmatprep.subr.bf16.mxu0 0
        %575 = vmatpush2.bf16.xpose.msra.mxu0 0
        %576 = vmatprep.subr.bf16.mxu0 0
        %577 = vmatpush2.bf16.xpose.msra.mxu0 0
        %578 = vmatprep.subr.bf16.mxu0 0
        %579 = vmatpush2.bf16.xpose.msra.mxu0 0
        %580 = vmatprep.mubr.bf16.mxu0 0
        %581 = vmatmul.mubr.bf16.gmra.mxu0 %v543
        %v582 = vpop.f32.mrf.mxu0
        %v583 = vadd.f32 0.0, %v582
        %v584 = vpop.f32.mrf.mxu0
        %v585 = vpop.f32.mrf.mxu0
        %v586 = vpop.f32.mrf.mxu0
        %587 = vdwg.mxu0
        %vm588 = vcmask 64512
        %v589 = vsel %vm588, %v537, -inf
        %590 = vmax.xlane.f32.xlu0 %v589
        %v591 = vpop.xlane.xlu0 %590
        %v592 = vsel %vm588, %v583, -inf
        %593 = vmax.xlane.f32.xlu0 %v592
        %v594 = vpop.xlane.xlu0 %593
        %v595 = vsub.f32 %v537, %v591
        %v596 = vsub.f32 %v583, %v594
        %v597 = vmul.f32 %v595, 1.442695
        %v598 = vpow.pop %v597
        %v599 = vmul.f32 %v596, 1.442695
        %v600 = vpow.pop %v599
        %v601 = vpack.c.bf16 %v598, %v598
        %v602 = vpack.c.bf16 %v600, %v600
        %v604 = vsel %vm588, %v601, 0
        %vm606 = vcmask 1043456
        %v608 = vsel %vm606, %v459, 0
        %610 = vmatprep.subr.bf16.mxu0 0
        %611 = vmatpush1.bf16.msra.mxu0 0
        %612 = vmatprep.subr.bf16.mxu0 0
        %613 = vmatpush1.bf16.msra.mxu0 0
        %614 = vmatprep.subr.bf16.mxu0 0
        %615 = vmatpush1.bf16.msra.mxu0 0
        %616 = vmatprep.subr.bf16.mxu0 0
        %617 = vmatpush1.bf16.msra.mxu0 0
        %618 = vmatprep.subr.bf16.mxu0 0
        %619 = vmatpush1.bf16.msra.mxu0 0
        %620 = vmatprep.subr.bf16.mxu0 0
        %621 = vmatpush1.bf16.msra.mxu0 0
        %622 = vmatprep.subr.bf16.mxu0 0
        %623 = vmatpush1.bf16.msra.mxu0 0
        %624 = vmatprep.subr.bf16.mxu0 0
        %625 = vmatpush1.bf16.msra.mxu0 %v608
        %626 = vmatprep.subr.bf16.mxu0 0
        %627 = vmatpush2.bf16.msra.mxu0 0
        %628 = vmatprep.subr.bf16.mxu0 0
        %629 = vmatpush2.bf16.msra.mxu0 0
        %630 = vmatprep.subr.bf16.mxu0 0
        %631 = vmatpush2.bf16.msra.mxu0 0
        %632 = vmatprep.subr.bf16.mxu0 0
        %633 = vmatpush2.bf16.msra.mxu0 0
        %634 = vmatprep.subr.bf16.mxu0 0
        %635 = vmatpush2.bf16.msra.mxu0 0
        %636 = vmatprep.subr.bf16.mxu0 0
        %637 = vmatpush2.bf16.msra.mxu0 0
        %638 = vmatprep.subr.bf16.mxu0 0
        %639 = vmatpush2.bf16.msra.mxu0 0
        %640 = vmatprep.subr.bf16.mxu0 0
        %641 = vmatpush2.bf16.msra.mxu0 0
        %642 = vmatprep.mubr.bf16.mxu0 0
        %643 = vmatmul.mubr.bf16.gmra.mxu0 %v604
        %v644 = vpop.f32.mrf.mxu0
        %v645 = vadd.f32 0.0, %v644
        %v646 = vpop.f32.mrf.mxu0
        %v647 = vpop.f32.mrf.mxu0
        %v648 = vpop.f32.mrf.mxu0
        %649 = vdwg.mxu0
        %v651 = vsel %vm588, %v602, 0
        %v654 = vsel %vm606, %v460, 0
        %656 = vmatprep.subr.bf16.mxu0 0
        %657 = vmatpush1.bf16.msra.mxu0 0
        %658 = vmatprep.subr.bf16.mxu0 0
        %659 = vmatpush1.bf16.msra.mxu0 0
        %660 = vmatprep.subr.bf16.mxu0 0
        %661 = vmatpush1.bf16.msra.mxu0 0
        %662 = vmatprep.subr.bf16.mxu0 0
        %663 = vmatpush1.bf16.msra.mxu0 0
        %664 = vmatprep.subr.bf16.mxu0 0
        %665 = vmatpush1.bf16.msra.mxu0 0
        %666 = vmatprep.subr.bf16.mxu0 0
        %667 = vmatpush1.bf16.msra.mxu0 0
        %668 = vmatprep.subr.bf16.mxu0 0
        %669 = vmatpush1.bf16.msra.mxu0 0
        %670 = vmatprep.subr.bf16.mxu0 0
        %671 = vmatpush1.bf16.msra.mxu0 %v654
        %672 = vmatprep.subr.bf16.mxu0 0
        %673 = vmatpush2.bf16.msra.mxu0 0
        %674 = vmatprep.subr.bf16.mxu0 0
        %675 = vmatpush2.bf16.msra.mxu0 0
        %676 = vmatprep.subr.bf16.mxu0 0
        %677 = vmatpush2.bf16.msra.mxu0 0
        %678 = vmatprep.subr.bf16.mxu0 0
        %679 = vmatpush2.bf16.msra.mxu0 0
        %680 = vmatprep.subr.bf16.mxu0 0
        %681 = vmatpush2.bf16.msra.mxu0 0
        %682 = vmatprep.subr.bf16.mxu0 0
        %683 = vmatpush2.bf16.msra.mxu0 0
        %684 = vmatprep.subr.bf16.mxu0 0
        %685 = vmatpush2.bf16.msra.mxu0 0
        %686 = vmatprep.subr.bf16.mxu0 0
        %687 = vmatpush2.bf16.msra.mxu0 0
        %688 = vmatprep.mubr.bf16.mxu0 0
        %689 = vmatmul.mubr.bf16.gmra.mxu0 %v651
        %v690 = vpop.f32.mrf.mxu0
        %v691 = vadd.f32 0.0, %v690
        %v692 = vpop.f32.mrf.mxu0
        %v693 = vpop.f32.mrf.mxu0
        %v694 = vpop.f32.mrf.mxu0
        %695 = vdwg.mxu0
        %v696 = vsel %vm588, %v598, 0.0
        %697 = vadd.xlane.f32.xlu0 %v696
        %v698 = vpop.xlane.xlu0 %697
        %v699 = vsel %vm588, %v600, 0.0
        %700 = vadd.xlane.f32.xlu0 %v699
        %v701 = vpop.xlane.xlu0 %700
        %v702 = vrcp.pop %v698
        %v703 = vrcp.pop %v701
        %v704 = vmul.f32 %v645, %v702
        %v705 = vmul.f32 %v691, %v703
        %v706 = vpack.c.bf16 %v477, %v477
        %v707 = vpack.c.bf16 %v478, %v478
        %v708 = vpack.c.bf16 %v462, %v461
        %v709 = vpack.c.bf16 %v464, %v463
        %v711 = vsel %vm495, %v706, 0
        %713 = vmatprep.subr.bf16.mxu0 0
        %714 = vmatpush1.bf16.msra.mxu0 0
        %715 = vmatprep.subr.bf16.mxu0 0
        %716 = vmatpush1.bf16.msra.mxu0 0
        %717 = vmatprep.subr.bf16.mxu0 0
        %718 = vmatpush1.bf16.msra.mxu0 0
        %719 = vmatprep.subr.bf16.mxu0 0
        %720 = vmatpush1.bf16.msra.mxu0 0
        %721 = vmatprep.subr.bf16.mxu0 0
        %722 = vmatpush1.bf16.msra.mxu0 0
        %723 = vmatprep.subr.bf16.mxu0 0
        %724 = vmatpush1.bf16.msra.mxu0 0
        %725 = vmatprep.subr.bf16.mxu0 0
        %726 = vmatpush1.bf16.msra.mxu0 0
        %727 = vmatprep.subr.bf16.mxu0 0
        %728 = vmatpush1.bf16.msra.mxu0 %v708
        %729 = vmatprep.subr.bf16.mxu0 0
        %730 = vmatpush2.bf16.msra.mxu0 0
        %731 = vmatprep.subr.bf16.mxu0 0
        %732 = vmatpush2.bf16.msra.mxu0 0
        %733 = vmatprep.subr.bf16.mxu0 0
        %734 = vmatpush2.bf16.msra.mxu0 0
        %735 = vmatprep.subr.bf16.mxu0 0
        %736 = vmatpush2.bf16.msra.mxu0 0
        %737 = vmatprep.subr.bf16.mxu0 0
        %738 = vmatpush2.bf16.msra.mxu0 0
        %739 = vmatprep.subr.bf16.mxu0 0
        %740 = vmatpush2.bf16.msra.mxu0 0
        %741 = vmatprep.subr.bf16.mxu0 0
        %742 = vmatpush2.bf16.msra.mxu0 0
        %743 = vmatprep.subr.bf16.mxu0 0
        %744 = vmatpush2.bf16.msra.mxu0 0
        %745 = vmatprep.mubr.bf16.mxu0 0
        %746 = vmatmul.mubr.bf16.gmra.mxu0 %v711
        %v747 = vpop.f32.mrf.mxu0
        %v748 = vadd.f32 0.0, %v747
        %v749 = vpop.f32.mrf.mxu0
        %v750 = vpop.f32.mrf.mxu0
        %v751 = vpop.f32.mrf.mxu0
        %752 = vdwg.mxu0
        %v754 = vsel %vm495, %v707, 0
        %756 = vmatprep.subr.bf16.mxu0 0
        %757 = vmatpush1.bf16.msra.mxu0 0
        %758 = vmatprep.subr.bf16.mxu0 0
        %759 = vmatpush1.bf16.msra.mxu0 0
        %760 = vmatprep.subr.bf16.mxu0 0
        %761 = vmatpush1.bf16.msra.mxu0 0
        %762 = vmatprep.subr.bf16.mxu0 0
        %763 = vmatpush1.bf16.msra.mxu0 0
        %764 = vmatprep.subr.bf16.mxu0 0
        %765 = vmatpush1.bf16.msra.mxu0 0
        %766 = vmatprep.subr.bf16.mxu0 0
        %767 = vmatpush1.bf16.msra.mxu0 0
        %768 = vmatprep.subr.bf16.mxu0 0
        %769 = vmatpush1.bf16.msra.mxu0 0
        %770 = vmatprep.subr.bf16.mxu0 0
        %771 = vmatpush1.bf16.msra.mxu0 %v709
        %772 = vmatprep.subr.bf16.mxu0 0
        %773 = vmatpush2.bf16.msra.mxu0 0
        %774 = vmatprep.subr.bf16.mxu0 0
        %775 = vmatpush2.bf16.msra.mxu0 0
        %776 = vmatprep.subr.bf16.mxu0 0
        %777 = vmatpush2.bf16.msra.mxu0 0
        %778 = vmatprep.subr.bf16.mxu0 0
        %779 = vmatpush2.bf16.msra.mxu0 0
        %780 = vmatprep.subr.bf16.mxu0 0
        %781 = vmatpush2.bf16.msra.mxu0 0
        %782 = vmatprep.subr.bf16.mxu0 0
        %783 = vmatpush2.bf16.msra.mxu0 0
        %784 = vmatprep.subr.bf16.mxu0 0
        %785 = vmatpush2.bf16.msra.mxu0 0
        %786 = vmatprep.subr.bf16.mxu0 0
        %787 = vmatpush2.bf16.msra.mxu0 0
        %788 = vmatprep.mubr.bf16.mxu0 0
        %789 = vmatmul.mubr.bf16.gmra.mxu0 %v754
        %v790 = vpop.f32.mrf.mxu0
        %v791 = vadd.f32 0.0, %v790
        %v792 = vpop.f32.mrf.mxu0
        %v793 = vpop.f32.mrf.mxu0
        %v794 = vpop.f32.mrf.mxu0
        %795 = vdwg.mxu0
        %v798 = vlaneseq
        %v799 = vshrl.u32 %v798, 7
        %v800 = vsub.s32 0, %v799
        %v801 = vrot.slane %v465, %v800
        %v802 = vlaneseq
        %v803 = vshrl.u32 %v802, 7
        %v804 = vsub.s32 0, %v803
        %v805 = vrot.slane %v466, %v804
        %v808 = vmul.f32 %v477, %v801
        %v809 = vmul.f32 %v478, %v805
        %v810 = vsel %vm495, %v808, 0.0
        %811 = vadd.xlane.f32.xlu0 %v810
        %v812 = vpop.xlane.xlu0 %811
        %v813 = vsel %vm495, %v809, 0.0
        %814 = vadd.xlane.f32.xlu0 %v813
        %v815 = vpop.xlane.xlu0 %814
        %v816 = vrcp.pop %v812
        %v817 = vrcp.pop %v815
        %v818 = vmul.f32 %v748, %v816
        %v819 = vmul.f32 %v791, %v817
        %v820 = vpack.c.bf16 %v489, %v489
        %v821 = vpack.c.bf16 %v490, %v490
        %822 = vxpose.xlu0.c.b16.start [1/8] %v820, 128
        %823 = vxpose.xlu0.c.b16.cont [2/8] 0, 128
        %824 = vxpose.xlu0.c.b16.cont [3/8] 0, 128
        %825 = vxpose.xlu0.c.b16.cont [4/8] 0, 128
        %826 = vxpose.xlu0.c.b16.cont [5/8] 0, 128
        %827 = vxpose.xlu0.c.b16.cont [6/8] 0, 128
        %828 = vxpose.xlu0.c.b16.cont [7/8] 0, 128
        %829 = vxpose.xlu0.c.b16.end [8/8] 0, 128
        %v830 = vpop.trf.xlu0
        %v831 = vpop.trf.xlu0
        %v832 = vpop.trf.xlu0
        %v833 = vpop.trf.xlu0
        %v834 = vpop.trf.xlu0
        %v835 = vpop.trf.xlu0
        %v836 = vpop.trf.xlu0
        %v837 = vpop.trf.xlu0
        %v839 = vsel %vm588, %v830, 0
        %841 = vmatprep.subr.bf16.mxu0 0
        %842 = vmatpush1.bf16.msra.mxu0 0
        %843 = vmatprep.subr.bf16.mxu0 0
        %844 = vmatpush1.bf16.msra.mxu0 0
        %845 = vmatprep.subr.bf16.mxu0 0
        %846 = vmatpush1.bf16.msra.mxu0 0
        %847 = vmatprep.subr.bf16.mxu0 0
        %848 = vmatpush1.bf16.msra.mxu0 0
        %849 = vmatprep.subr.bf16.mxu0 0
        %850 = vmatpush1.bf16.msra.mxu0 0
        %851 = vmatprep.subr.bf16.mxu0 0
        %852 = vmatpush1.bf16.msra.mxu0 0
        %853 = vmatprep.subr.bf16.mxu0 0
        %854 = vmatpush1.bf16.msra.mxu0 0
        %855 = vmatprep.subr.bf16.mxu0 0
        %856 = vmatpush1.bf16.msra.mxu0 %v608
        %857 = vmatprep.subr.bf16.mxu0 0
        %858 = vmatpush2.bf16.msra.mxu0 0
        %859 = vmatprep.subr.bf16.mxu0 0
        %860 = vmatpush2.bf16.msra.mxu0 0
        %861 = vmatprep.subr.bf16.mxu0 0
        %862 = vmatpush2.bf16.msra.mxu0 0
        %863 = vmatprep.subr.bf16.mxu0 0
        %864 = vmatpush2.bf16.msra.mxu0 0
        %865 = vmatprep.subr.bf16.mxu0 0
        %866 = vmatpush2.bf16.msra.mxu0 0
        %867 = vmatprep.subr.bf16.mxu0 0
        %868 = vmatpush2.bf16.msra.mxu0 0
        %869 = vmatprep.subr.bf16.mxu0 0
        %870 = vmatpush2.bf16.msra.mxu0 0
        %871 = vmatprep.subr.bf16.mxu0 0
        %872 = vmatpush2.bf16.msra.mxu0 0
        %873 = vmatprep.mubr.bf16.mxu0 0
        %874 = vmatmul.mubr.bf16.gmra.mxu0 %v839
        %v875 = vpop.f32.mrf.mxu0
        %v876 = vadd.f32 0.0, %v875
        %v877 = vpop.f32.mrf.mxu0
        %v878 = vpop.f32.mrf.mxu0
        %v879 = vadd.f32 0.0, %v878
        %v880 = vpop.f32.mrf.mxu0
        %881 = vdwg.mxu0
        %882 = vxpose.xlu0.c.b16.start [1/8] %v821, 128
        %883 = vxpose.xlu0.c.b16.cont [2/8] 0, 128
        %884 = vxpose.xlu0.c.b16.cont [3/8] 0, 128
        %885 = vxpose.xlu0.c.b16.cont [4/8] 0, 128
        %886 = vxpose.xlu0.c.b16.cont [5/8] 0, 128
        %887 = vxpose.xlu0.c.b16.cont [6/8] 0, 128
        %888 = vxpose.xlu0.c.b16.cont [7/8] 0, 128
        %889 = vxpose.xlu0.c.b16.end [8/8] 0, 128
        %v890 = vpop.trf.xlu0
        %v891 = vpop.trf.xlu0
        %v892 = vpop.trf.xlu0
        %v893 = vpop.trf.xlu0
        %v894 = vpop.trf.xlu0
        %v895 = vpop.trf.xlu0
        %v896 = vpop.trf.xlu0
        %v897 = vpop.trf.xlu0
        %v899 = vsel %vm588, %v890, 0
        %901 = vmatprep.subr.bf16.mxu0 0
        %902 = vmatpush1.bf16.msra.mxu0 0
        %903 = vmatprep.subr.bf16.mxu0 0
        %904 = vmatpush1.bf16.msra.mxu0 0
        %905 = vmatprep.subr.bf16.mxu0 0
        %906 = vmatpush1.bf16.msra.mxu0 0
        %907 = vmatprep.subr.bf16.mxu0 0
        %908 = vmatpush1.bf16.msra.mxu0 0
        %909 = vmatprep.subr.bf16.mxu0 0
        %910 = vmatpush1.bf16.msra.mxu0 0
        %911 = vmatprep.subr.bf16.mxu0 0
        %912 = vmatpush1.bf16.msra.mxu0 0
        %913 = vmatprep.subr.bf16.mxu0 0
        %914 = vmatpush1.bf16.msra.mxu0 0
        %915 = vmatprep.subr.bf16.mxu0 0
        %916 = vmatpush1.bf16.msra.mxu0 %v654
        %917 = vmatprep.subr.bf16.mxu0 0
        %918 = vmatpush2.bf16.msra.mxu0 0
        %919 = vmatprep.subr.bf16.mxu0 0
        %920 = vmatpush2.bf16.msra.mxu0 0
        %921 = vmatprep.subr.bf16.mxu0 0
        %922 = vmatpush2.bf16.msra.mxu0 0
        %923 = vmatprep.subr.bf16.mxu0 0
        %924 = vmatpush2.bf16.msra.mxu0 0
        %925 = vmatprep.subr.bf16.mxu0 0
        %926 = vmatpush2.bf16.msra.mxu0 0
        %927 = vmatprep.subr.bf16.mxu0 0
        %928 = vmatpush2.bf16.msra.mxu0 0
        %929 = vmatprep.subr.bf16.mxu0 0
        %930 = vmatpush2.bf16.msra.mxu0 0
        %931 = vmatprep.subr.bf16.mxu0 0
        %932 = vmatpush2.bf16.msra.mxu0 0
        %933 = vmatprep.mubr.bf16.mxu0 0
        %934 = vmatmul.mubr.bf16.gmra.mxu0 %v899
        %v935 = vpop.f32.mrf.mxu0
        %v936 = vadd.f32 0.0, %v935
        %v937 = vpop.f32.mrf.mxu0
        %v938 = vpop.f32.mrf.mxu0
        %v939 = vadd.f32 0.0, %v938
        %v940 = vpop.f32.mrf.mxu0
        %941 = vdwg.mxu0
        %v942 = vadd.f32 %v461, %v876
        %v943 = vadd.f32 %v462, %v879
        %v944 = vadd.f32 %v463, %v936
        %v945 = vadd.f32 %v464, %v939
        %946 = vst.msk [vmem:[#allocation2] sm:$0xff] %vm495, %v942
        %947 = vst.msk [vmem:[#allocation2 + $0x8] sm:$0xff] %vm495, %v943
        %948 = vst.msk [vmem:[#allocation2 + $0x10] sm:$0xff] %vm495, %v944
        %949 = vst.msk [vmem:[#allocation2 + $0x18] sm:$0xff] %vm495, %v945
        %v950 = vsel %vm495, %v489, 0.0
        %v951 = vrot.slane %v950, 4
        %v952 = vadd.f32 %v950, %v951
        %v953 = vrot.slane %v952, 2
        %v954 = vadd.f32 %v952, %v953
        %v955 = vrot.slane %v954, 1
        %v956 = vadd.f32 %v954, %v955
        %v957 = vsel %vm495, %v490, 0.0
        %v958 = vrot.slane %v957, 4
        %v959 = vadd.f32 %v957, %v958
        %v960 = vrot.slane %v959, 2
        %v961 = vadd.f32 %v959, %v960
        %v962 = vrot.slane %v961, 1
        %v963 = vadd.f32 %v961, %v962
        %v964 = vadd.f32 %v465, %v956
        %v965 = vadd.f32 %v466, %v963
        %vm966 = vcmask 122880
        %967 = vst.msk [vmem:[#allocation3] sm:$0x1] %vm966, %v964
        %968 = vst.msk [vmem:[#allocation3 + $0x1] sm:$0x1] %vm966, %v965
        %v969 = vld [vmem:[%s427] sm:$0x1]
        %v970 = vld [vmem:[%s427 + $0x1] sm:$0x1]
        %v973 = vlaneseq
        %v974 = vshrl.u32 %v973, 7
        %v975 = vsub.s32 0, %v974
        %v976 = vrot.slane %v969, %v975
        %v977 = vlaneseq
        %v978 = vshrl.u32 %v977, 7
        %v979 = vsub.s32 0, %v978
        %v980 = vrot.slane %v970, %v979
        %v983 = vmul.f32 %v976, %v818
        %v984 = vmul.f32 %v980, %v819
        %v985 = vsub.f32 1.0, %v969
        %v986 = vsub.f32 1.0, %v970
        %v989 = vlaneseq
        %v990 = vshrl.u32 %v989, 7
        %v991 = vsub.s32 0, %v990
        %v992 = vrot.slane %v985, %v991
        %v993 = vlaneseq
        %v994 = vshrl.u32 %v993, 7
        %v995 = vsub.s32 0, %v994
        %v996 = vrot.slane %v986, %v995
        %v999 = vmul.f32 %v992, %v704
        %v1000 = vmul.f32 %v996, %v705
        %v1001 = vadd.f32 %v983, %v999
        %v1002 = vadd.f32 %v984, %v1000
        %v1003 = vpack.c.bf16 %v1001, %v1001
        %v1004 = vpack.c.bf16 %v1002, %v1002
        %vm1005 = vcmask 125952
        %1006 = vst.msk [vmem:[%s435] sm:$0xf] %vm1005, %v1003
        %1007 = vst.msk [vmem:[%s435 + $0x4] sm:$0xf] %vm1005, %v1004
        %s1008 = smul.u32 %s19, 2
        %s1009 = sadd.s32 %s1008, %s20
        %p1010 = scmp.lt.s32.totalorder %s1009, 3
        %s1011 = scalar_select %p1010, %s1009, 3
        %s1012 = smul.addr %s1011, 2
        %s1013 = smul.addr %s1012, 4
        %s1014 = scalar_lea.vmem %s4, %s1013
        // Predicated region
        $region164: #{compressive_memory_forward.4} parent=146 // pred_check
          %p1015 = pneg %p159
        $region165: #{compressive_memory_forward.4} parent=146 // pred_check_branch
          %1017 = sbr.rel (%p1015) target = $region167
        $region166: #{compressive_memory_forward.4} parent=146 // pred_region
          %s1018 = smul.u32 %s19, 2
          %s1019 = sadd.s32 %s1018, %s20
        $region167: #{compressive_memory_forward.4} parent=146 // pred_fallthru
          _
      $region147: #{compressive_memory_forward.4} parent=5 // pred_fallthru
        _
      %p1020 = scmp.le.s32.totalorder 2, %s10
      // Predicated region
      $region168: #{compressive_memory_forward.4} parent=5 // pred_check
        %p1021 = pneg %p1020
      $region169: #{compressive_memory_forward.4} parent=5 // pred_check_branch
        %1023 = sbr.rel (%p1021) target = $region171
      $region170: #{compressive_memory_forward.4} parent=5 // pred_region
        %s1024 = ssub.s32 %s10, 2
        // Predicated region
        $region172: #{compressive_memory_forward.4} parent=170 // pred_check
          %p1025 = pneg %p165
        $region173: #{compressive_memory_forward.4} parent=170 // pred_check_branch
          %1027 = sbr.rel (%p1025) target = $region175
        $region174: #{compressive_memory_forward.4} parent=170 // pred_region
          %s1028 = smul.u32 %s21, 2
          %s1029 = sadd.s32 %s1028, %s22
          %p1030 = scmp.lt.s32.totalorder %s1029, 3
          %s1031 = scalar_select %p1030, %s1029, 3
          %s1032 = smul.addr %s1031, 2
          %s1033 = smul.addr %s1032, 4
          %s1034 = scalar_lea.vmem %s4, %s1033
        $region175: #{compressive_memory_forward.4} parent=170 // pred_fallthru
          _
      $region171: #{compressive_memory_forward.4} parent=5 // pred_fallthru
        _
    $region6: #{compressive_memory_forward.4} parent=1 // loop_footer
      %s14 = sadd.s32 1, %s10
    $region7: #{compressive_memory_forward.4} parent=1 // loop_footer_branch
      %9 = sbr.rel target = $region3
    $region8: #{compressive_memory_forward.4} parent=1 // loop_exit
      _

</llo_original>
